<compile_context>
chip_gen: v6e
topology: v6e:2x2x1
jax: 0.10.0
libtpu: 0.0.40
codegen_flags: <defaults>
</compile_context>

<pallas_src>
import functools
import math

import jax
import jax.numpy as jnp
from jax.experimental import pallas as pl
from jax.experimental.pallas import tpu as pltpu

STATE_DIM = 16
ACTION_DIM = 8
HIDDEN = 256
BATCH = 8
ACTION_LIMIT = 1.0
LOG_SIGMA_MIN = -20.0
LOG_SIGMA_MAX = 2.0
BIAS_ROWS = 16                       # bias block appended to the w_heads slab
_HALF_LOG_2PI = 0.5 * math.log(2.0 * math.pi)
_TWO_LOG_2 = 2.0 * math.log(2.0)


def _softplus(x):
    # numerically stable softplus from ops that lower cleanly on TPU (EUP slot)
    return jnp.maximum(x, 0.0) + jnp.log1p(jnp.exp(-jnp.abs(x)))


def squashed_actor_kernel(action_limit,
                          xe_ref,       # (2B, STATE_DIM) f32: state rows 0:B, eps rows B:2B (cols 0:A)
                          w_emb_ref,    # (STATE_DIM+H, H)   bf16  [we0; we1]
                          w_heads_ref,  # (2H+BIAS_ROWS, 2H) bf16  rows 0:H    = [wm0 | ws0]
                                        #                          rows H:2H   = [wm1 | ws1]
                                        #                          rows 2H:2H+16 = packed biases
                          w_out_ref,    # (2H, 2A) bf16  blockdiag(wm2, ws2)
                          out_ref):     # (B, 2A)  f32   [action | log_prob broadcast]
    f32, bf16 = jnp.float32, jnp.bfloat16
    nb = xe_ref.shape[0] // 2
    x = xe_ref[0:nb, :]                          # (B, STATE_DIM) f32
    eps = xe_ref[nb:2 * nb, 0:ACTION_DIM]        # (B, ACTION_DIM) f32

    def dot(a, w):
        # bf16 MXU operands, f32 accumulation
        return jnp.dot(a.astype(bf16), w, preferred_element_type=f32)

    # packed biases: one aligned load, upcast once, f32 adds throughout
    b = w_heads_ref[2 * HIDDEN:2 * HIDDEN + BIAS_ROWS, :].astype(f32)   # (16, 2H)

    # embedding MLP: state -> H -> H, ReLU
    h = jnp.maximum(dot(x, w_emb_ref[0:STATE_DIM, :]) + b[0:1, 0:HIDDEN], 0.0)
    emb = jnp.maximum(dot(h, w_emb_ref[STATE_DIM:STATE_DIM + HIDDEN, :])
                      + b[0:1, HIDDEN:2 * HIDDEN], 0.0)

    # head layer 0 — fused across mu / log_sigma heads (shared input emb): (B, 2H)
    h0 = jnp.maximum(dot(emb, w_heads_ref[0:HIDDEN, :]) + b[1:2, :], 0.0)

    # head layer 1 — inputs differ, two dots on tile-aligned slices
    h1m = jnp.maximum(dot(h0[:, 0:HIDDEN],
                          w_heads_ref[HIDDEN:2 * HIDDEN, 0:HIDDEN])
                      + b[2:3, 0:HIDDEN], 0.0)
    h1s = jnp.maximum(dot(h0[:, HIDDEN:2 * HIDDEN],
                          w_heads_ref[HIDDEN:2 * HIDDEN, HIDDEN:2 * HIDDEN])
                      + b[2:3, HIDDEN:2 * HIDDEN], 0.0)

    # final layer — fused via block-diagonal (2H, 2A) weight: one dot for both heads
    h1 = jnp.concatenate([h1m, h1s], axis=-1)                         # (B, 2H)
    heads = dot(h1, w_out_ref[...]) + b[3:4, 0:2 * ACTION_DIM]        # (B, 2A)

    # one tanh over the whole heads tile, then slice mu / log_sigma
    th = jnp.tanh(heads)
    mu = th[:, 0:ACTION_DIM]
    # clamp AFTER tanh, exactly as in the PyTorch module (no-op, kept for fidelity)
    log_sigma = jnp.clip(th[:, ACTION_DIM:2 * ACTION_DIM],
                         LOG_SIGMA_MIN, LOG_SIGMA_MAX)
    sigma = jnp.exp(log_sigma)

    # reparameterized sample: (pre - mu) / sigma == eps exactly
    pre = mu + sigma * eps

    logp = jnp.sum(-0.5 * eps * eps - log_sigma - _HALF_LOG_2PI,
                   axis=-1, keepdims=True)
    # module's literal correction: 2*log(2) - pre - softplus(-2*pre)
    corr = _TWO_LOG_2 - pre - _softplus(-2.0 * pre)
    logp = logp - jnp.sum(corr, axis=-1, keepdims=True)

    action = action_limit * jnp.tanh(pre)

    # single (B, 2A) store: action in lanes 0..A-1, log_prob broadcast in A..2A-1
    out_ref[...] = jnp.concatenate(
        [action, jnp.broadcast_to(logp, (nb, ACTION_DIM))], axis=-1)


# ---------------------------------------------------------------------------
# Host-side packing (one-time; amortized across policy evaluations)
# ---------------------------------------------------------------------------
def pack_params(params):
    (we0, be0, we1, be1,
     wm0, bm0, wm1, bm1, wm2, bm2,
     ws0, bs0, ws1, bs1, ws2, bs2) = params
    f32, bf16 = jnp.float32, jnp.bfloat16

    w_emb = jnp.concatenate([we0, we1], axis=0).astype(bf16)           # (272, 256)

    zA = jnp.zeros((HIDDEN, ACTION_DIM), f32)
    w_out = jnp.concatenate(
        [jnp.concatenate([wm2, zA], axis=1),
         jnp.concatenate([zA, ws2], axis=1)], axis=0).astype(bf16)     # (512, 16)

    b_all = jnp.concatenate(
        [jnp.concatenate([be0, be1], axis=1),                          # row 0
         jnp.concatenate([bm0, bs0], axis=1),                          # row 1
         jnp.concatenate([bm1, bs1], axis=1),                          # row 2
         jnp.concatenate([bm2, bs2,
                          jnp.zeros((1, 2 * HIDDEN - 2 * ACTION_DIM), f32)],
                         axis=1),                                      # row 3
         jnp.zeros((BIAS_ROWS - 4, 2 * HIDDEN), f32)], axis=0)         # (16, 512)

    w_heads = jnp.concatenate(
        [jnp.concatenate([wm0, ws0], axis=1),                          # (256, 512)
         jnp.concatenate([wm1, ws1], axis=1),                          # (256, 512)
         b_all], axis=0).astype(bf16)                                  # (528, 512)

    return w_emb, w_heads, w_out


def squashed_actor_forward(state, eps, packed_params, action_limit=ACTION_LIMIT):
    """Returns (action, log_prob, hc). hc is None (feedforward approximator)."""
    w_emb, w_heads, w_out = packed_params
    batch = state.shape[0]

    # pack state + eps into a single slab (one DMA instead of two tiny ones);
    # sublane offset `batch` (=8) is (8,128)-tile aligned, so the in-kernel
    # split is a zero-cost static view.
    pad_w = STATE_DIM - ACTION_DIM
    eps_pad = jnp.pad(eps, ((0, 0), (0, pad_w))) if pad_w else eps
    xe = jnp.concatenate([state, eps_pad], axis=0).astype(jnp.float32)  # (2B, 16)

    vmem = pl.BlockSpec(memory_space=pltpu.MemorySpace.VMEM)
    kernel = functools.partial(squashed_actor_kernel, float(action_limit))

    flops = 2 * batch * (STATE_DIM * HIDDEN            # emb layer 0
                         + 3 * HIDDEN * HIDDEN         # emb layer 1 + h1m + h1s
                         + HIDDEN * 2 * HIDDEN         # fused head layer 0
                         + 2 * HIDDEN * 2 * ACTION_DIM)  # fused output layer
    transcendentals = 6 * batch * ACTION_DIM
    bytes_accessed = (w_emb.size + w_heads.size + w_out.size) * 2 \
        + xe.size * 4 + batch * 2 * ACTION_DIM * 4

    out = pl.pallas_call(
        kernel,
        out_shape=jax.ShapeDtypeStruct((batch, 2 * ACTION_DIM), jnp.float32),
        in_specs=[vmem] * 4,
        out_specs=vmem,
        cost_estimate=pl.CostEstimate(flops=flops,
                                      transcendentals=transcendentals,
                                      bytes_accessed=bytes_accessed),
    )(xe, w_emb, w_heads, w_out)

    action = out[:, :ACTION_DIM]
    log_prob = out[:, ACTION_DIM]
    return action, log_prob, None


# ---------------------------------------------------------------------------
# Parameter init (matches torch.nn.Linear default init) + pure-JAX reference
# ---------------------------------------------------------------------------
def init_linear(key, fan_in, fan_out):
    kw, kb = jax.random.split(key)
    bound = 1.0 / math.sqrt(fan_in)
    w = jax.random.uniform(kw, (fan_in, fan_out), jnp.float32, -bound, bound)
    b = jax.random.uniform(kb, (1, fan_out), jnp.float32, -bound, bound)
    return w, b


def init_params(key):
    layer_dims = [
        (STATE_DIM, HIDDEN), (HIDDEN, HIDDEN),                     # embedding
        (HIDDEN, HIDDEN), (HIDDEN, HIDDEN), (HIDDEN, ACTION_DIM),  # mu head
        (HIDDEN, HIDDEN), (HIDDEN, HIDDEN), (HIDDEN, ACTION_DIM),  # log_sigma head
    ]
    keys = jax.random.split(key, len(layer_dims))
    params = []
    for k, (fi, fo) in zip(keys, layer_dims):
        w, b = init_linear(k, fi, fo)
        params.extend([w, b])
    return params


def reference_forward(state, eps, params, action_limit=ACTION_LIMIT):
    (we0, be0, we1, be1,
     wm0, bm0, wm1, bm1, wm2, bm2,
     ws0, bs0, ws1, bs1, ws2, bs2) = params
    relu = lambda v: jnp.maximum(v, 0.0)
    emb = relu(relu(state @ we0 + be0) @ we1 + be1)
    hm = relu(relu(emb @ wm0 + bm0) @ wm1 + bm1)
    mu = jnp.tanh(hm @ wm2 + bm2)
    hs = relu(relu(emb @ ws0 + bs0) @ ws1 + bs1)
    log_sigma = jnp.clip(jnp.tanh(hs @ ws2 + bs2), LOG_SIGMA_MIN, LOG_SIGMA_MAX)
    sigma = jnp.exp(log_sigma)
    pre = mu + sigma * eps
    logp = jnp.sum(-0.5 * eps * eps - log_sigma - _HALF_LOG_2PI, axis=-1)
    logp = logp - jnp.sum(_TWO_LOG_2 - pre - jax.nn.softplus(-2.0 * pre), axis=-1)
    action = action_limit * jnp.tanh(pre)
    return action, logp


if __name__ == "__main__":
    root = jax.random.PRNGKey(0)
    k_state, k_eps, k_params = jax.random.split(root, 3)

    state = jax.random.normal(k_state, (BATCH, STATE_DIM), dtype=jnp.float32)
    # stochastic=True path: standard-normal noise for the reparameterized sample
    eps = jax.random.normal(k_eps, (BATCH, ACTION_DIM), dtype=jnp.float32)
    params = init_params(k_params)
    packed = pack_params(params)          # one-time packing, reused across calls

    forward = jax.jit(functools.partial(squashed_actor_forward,
                                        action_limit=ACTION_LIMIT))
    action, log_prob, hc = forward(state, eps, packed)
    jax.block_until_ready((action, log_prob))

    assert action.shape == (BATCH, ACTION_DIM)
    assert log_prob.shape == (BATCH,)
    assert hc is None
    assert bool(jnp.all(jnp.isfinite(action))) and bool(jnp.all(jnp.isfinite(log_prob)))

    # loose tolerance: kernel stores weights / runs MXU in bf16, reference is f32
    action_ref, log_prob_ref = reference_forward(state, eps, params)
    assert bool(jnp.allclose(action, action_ref, atol=2e-1, rtol=1e-1))
    assert bool(jnp.allclose(log_prob, log_prob_ref, atol=2e-1, rtol=1e-1))

    print("KERNEL_OK")
</pallas_src>

<mosaic_0001>
module attributes {stable_mosaic.version = 11 : i64} {
  func.func @squashed_actor_kernel(%arg0: memref<16x16xf32, #tpu.memory_space<vmem>>, %arg1: memref<272x256xbf16, #tpu.memory_space<vmem>>, %arg2: memref<528x512xbf16, #tpu.memory_space<vmem>>, %arg3: memref<512x16xbf16, #tpu.memory_space<vmem>>, %arg4: memref<8x16xf32, #tpu.memory_space<vmem>>) attributes {dimension_semantics = [], scalar_prefetch = 0 : i64, scratch_operands = 0 : i64, tpu.core_type = #tpu.core_type<tc>} {
    %c0 = arith.constant 0 : index
    %c0_0 = arith.constant 0 : index
    %0 = vector.load %arg0[%c0, %c0_0] : memref<16x16xf32, #tpu.memory_space<vmem>>, vector<8x16xf32>
    %c8 = arith.constant 8 : index
    %c0_1 = arith.constant 0 : index
    %1 = vector.load %arg0[%c8, %c0_1] : memref<16x16xf32, #tpu.memory_space<vmem>>, vector<8x8xf32>
    %c512 = arith.constant 512 : index
    %c0_2 = arith.constant 0 : index
    %2 = vector.load %arg2[%c512, %c0_2] : memref<528x512xbf16, #tpu.memory_space<vmem>>, vector<16x512xbf16>
    %3 = arith.extf %2 : vector<16x512xbf16> to vector<16x512xf32>
    %c0_3 = arith.constant 0 : index
    %c0_4 = arith.constant 0 : index
    %4 = vector.load %arg1[%c0_3, %c0_4] : memref<272x256xbf16, #tpu.memory_space<vmem>>, vector<16x256xbf16>
    %5 = arith.truncf %0 : vector<8x16xf32> to vector<8x16xbf16>
    %cst = arith.constant dense<0.000000e+00> : vector<8x256xf32>
    %6 = tpu.matmul %5, %4, %cst {dimension_numbers = #tpu.dot_dimension_numbers<[1], [0], [0], [1], [0, 0, 1, 1], [], []>} : vector<8x16xbf16>, vector<16x256xbf16>, vector<8x256xf32> -> vector<8x256xf32>
    %7 = vector.extract_strided_slice %3 {offsets = [0, 0], sizes = [1, 256], strides = [1, 1]} : vector<16x512xf32> to vector<1x256xf32>
    %8 = vector.broadcast %7 : vector<1x256xf32> to vector<8x256xf32>
    %9 = arith.addf %6, %8 : vector<8x256xf32>
    %cst_5 = arith.constant 0.000000e+00 : f32
    %10 = vector.broadcast %cst_5 : f32 to vector<8x256xf32>
    %11 = arith.maximumf %9, %10 : vector<8x256xf32>
    %c16 = arith.constant 16 : index
    %c0_6 = arith.constant 0 : index
    %12 = vector.load %arg1[%c16, %c0_6] : memref<272x256xbf16, #tpu.memory_space<vmem>>, vector<256x256xbf16>
    %13 = arith.truncf %11 : vector<8x256xf32> to vector<8x256xbf16>
    %cst_7 = arith.constant dense<0.000000e+00> : vector<8x256xf32>
    %14 = tpu.matmul %13, %12, %cst_7 {dimension_numbers = #tpu.dot_dimension_numbers<[1], [0], [0], [1], [0, 0, 1, 1], [], []>} : vector<8x256xbf16>, vector<256x256xbf16>, vector<8x256xf32> -> vector<8x256xf32>
    %15 = vector.extract_strided_slice %3 {offsets = [0, 256], sizes = [1, 256], strides = [1, 1]} : vector<16x512xf32> to vector<1x256xf32>
    %16 = vector.broadcast %15 : vector<1x256xf32> to vector<8x256xf32>
    %17 = arith.addf %14, %16 : vector<8x256xf32>
    %cst_8 = arith.constant 0.000000e+00 : f32
    %18 = vector.broadcast %cst_8 : f32 to vector<8x256xf32>
    %19 = arith.maximumf %17, %18 : vector<8x256xf32>
    %c0_9 = arith.constant 0 : index
    %c0_10 = arith.constant 0 : index
    %20 = vector.load %arg2[%c0_9, %c0_10] : memref<528x512xbf16, #tpu.memory_space<vmem>>, vector<256x512xbf16>
    %21 = arith.truncf %19 : vector<8x256xf32> to vector<8x256xbf16>
    %cst_11 = arith.constant dense<0.000000e+00> : vector<8x512xf32>
    %22 = tpu.matmul %21, %20, %cst_11 {dimension_numbers = #tpu.dot_dimension_numbers<[1], [0], [0], [1], [0, 0, 1, 1], [], []>} : vector<8x256xbf16>, vector<256x512xbf16>, vector<8x512xf32> -> vector<8x512xf32>
    %23 = vector.extract_strided_slice %3 {offsets = [1, 0], sizes = [1, 512], strides = [1, 1]} : vector<16x512xf32> to vector<1x512xf32>
    %24 = vector.broadcast %23 : vector<1x512xf32> to vector<8x512xf32>
    %25 = arith.addf %22, %24 : vector<8x512xf32>
    %cst_12 = arith.constant 0.000000e+00 : f32
    %26 = vector.broadcast %cst_12 : f32 to vector<8x512xf32>
    %27 = arith.maximumf %25, %26 : vector<8x512xf32>
    %28 = vector.extract_strided_slice %27 {offsets = [0, 0], sizes = [8, 256], strides = [1, 1]} : vector<8x512xf32> to vector<8x256xf32>
    %c256 = arith.constant 256 : index
    %c0_13 = arith.constant 0 : index
    %29 = vector.load %arg2[%c256, %c0_13] : memref<528x512xbf16, #tpu.memory_space<vmem>>, vector<256x256xbf16>
    %30 = arith.truncf %28 : vector<8x256xf32> to vector<8x256xbf16>
    %cst_14 = arith.constant dense<0.000000e+00> : vector<8x256xf32>
    %31 = tpu.matmul %30, %29, %cst_14 {dimension_numbers = #tpu.dot_dimension_numbers<[1], [0], [0], [1], [0, 0, 1, 1], [], []>} : vector<8x256xbf16>, vector<256x256xbf16>, vector<8x256xf32> -> vector<8x256xf32>
    %32 = vector.extract_strided_slice %3 {offsets = [2, 0], sizes = [1, 256], strides = [1, 1]} : vector<16x512xf32> to vector<1x256xf32>
    %33 = vector.broadcast %32 : vector<1x256xf32> to vector<8x256xf32>
    %34 = arith.addf %31, %33 : vector<8x256xf32>
    %cst_15 = arith.constant 0.000000e+00 : f32
    %35 = vector.broadcast %cst_15 : f32 to vector<8x256xf32>
    %36 = arith.maximumf %34, %35 : vector<8x256xf32>
    %37 = vector.extract_strided_slice %27 {offsets = [0, 256], sizes = [8, 256], strides = [1, 1]} : vector<8x512xf32> to vector<8x256xf32>
    %c256_16 = arith.constant 256 : index
    %c256_17 = arith.constant 256 : index
    %38 = vector.load %arg2[%c256_16, %c256_17] : memref<528x512xbf16, #tpu.memory_space<vmem>>, vector<256x256xbf16>
    %39 = arith.truncf %37 : vector<8x256xf32> to vector<8x256xbf16>
    %cst_18 = arith.constant dense<0.000000e+00> : vector<8x256xf32>
    %40 = tpu.matmul %39, %38, %cst_18 {dimension_numbers = #tpu.dot_dimension_numbers<[1], [0], [0], [1], [0, 0, 1, 1], [], []>} : vector<8x256xbf16>, vector<256x256xbf16>, vector<8x256xf32> -> vector<8x256xf32>
    %41 = vector.extract_strided_slice %3 {offsets = [2, 256], sizes = [1, 256], strides = [1, 1]} : vector<16x512xf32> to vector<1x256xf32>
    %42 = vector.broadcast %41 : vector<1x256xf32> to vector<8x256xf32>
    %43 = arith.addf %40, %42 : vector<8x256xf32>
    %cst_19 = arith.constant 0.000000e+00 : f32
    %44 = vector.broadcast %cst_19 : f32 to vector<8x256xf32>
    %45 = arith.maximumf %43, %44 : vector<8x256xf32>
    %46 = tpu.concatenate %36, %45 in 1 : vector<8x256xf32>, vector<8x256xf32> -> vector<8x512xf32>
    %c0_20 = arith.constant 0 : index
    %c0_21 = arith.constant 0 : index
    %47 = vector.load %arg3[%c0_20, %c0_21] : memref<512x16xbf16, #tpu.memory_space<vmem>>, vector<512x16xbf16>
    %48 = arith.truncf %46 : vector<8x512xf32> to vector<8x512xbf16>
    %cst_22 = arith.constant dense<0.000000e+00> : vector<8x16xf32>
    %49 = tpu.matmul %48, %47, %cst_22 {dimension_numbers = #tpu.dot_dimension_numbers<[1], [0], [0], [1], [0, 0, 1, 1], [], []>} : vector<8x512xbf16>, vector<512x16xbf16>, vector<8x16xf32> -> vector<8x16xf32>
    %50 = vector.extract_strided_slice %3 {offsets = [3, 0], sizes = [1, 16], strides = [1, 1]} : vector<16x512xf32> to vector<1x16xf32>
    %51 = vector.broadcast %50 : vector<1x16xf32> to vector<8x16xf32>
    %52 = arith.addf %49, %51 : vector<8x16xf32>
    %53 = math.tanh %52 : vector<8x16xf32>
    %54 = vector.extract_strided_slice %53 {offsets = [0, 0], sizes = [8, 8], strides = [1, 1]} : vector<8x16xf32> to vector<8x8xf32>
    %55 = vector.extract_strided_slice %53 {offsets = [0, 8], sizes = [8, 8], strides = [1, 1]} : vector<8x16xf32> to vector<8x8xf32>
    %cst_23 = arith.constant -2.000000e+01 : f32
    %cst_24 = arith.constant 2.000000e+00 : f32
    %56 = vector.broadcast %cst_23 : f32 to vector<8x8xf32>
    %57 = arith.maximumf %56, %55 : vector<8x8xf32>
    %58 = vector.broadcast %cst_24 : f32 to vector<8x8xf32>
    %59 = arith.minimumf %58, %57 : vector<8x8xf32>
    %60 = math.exp %59 : vector<8x8xf32>
    %61 = arith.mulf %60, %1 : vector<8x8xf32>
    %62 = arith.addf %54, %61 : vector<8x8xf32>
    %cst_25 = arith.constant -5.000000e-01 : f32
    %63 = vector.broadcast %cst_25 : f32 to vector<8x8xf32>
    %64 = arith.mulf %63, %1 : vector<8x8xf32>
    %65 = arith.mulf %64, %1 : vector<8x8xf32>
    %66 = arith.subf %65, %59 : vector<8x8xf32>
    %cst_26 = arith.constant 0.918938517 : f32
    %67 = vector.broadcast %cst_26 : f32 to vector<8x8xf32>
    %68 = arith.subf %66, %67 : vector<8x8xf32>
    %cst_27 = arith.constant dense<0.000000e+00> : vector<8xf32>
    %69 = vector.multi_reduction <add>, %68, %cst_27 [1] : vector<8x8xf32> to vector<8xf32>
    %70 = vector.shape_cast %69 : vector<8xf32> to vector<8x1xf32>
    %cst_28 = arith.constant 1.38629436 : f32
    %71 = vector.broadcast %cst_28 : f32 to vector<8x8xf32>
    %72 = arith.subf %71, %62 : vector<8x8xf32>
    %cst_29 = arith.constant -2.000000e+00 : f32
    %73 = vector.broadcast %cst_29 : f32 to vector<8x8xf32>
    %74 = arith.mulf %73, %62 : vector<8x8xf32>
    %cst_30 = arith.constant 0.000000e+00 : f32
    %75 = vector.broadcast %cst_30 : f32 to vector<8x8xf32>
    %76 = arith.maximumf %74, %75 : vector<8x8xf32>
    %77 = math.absf %74 : vector<8x8xf32>
    %cst_31 = arith.constant 0.000000e+00 : f32
    %78 = vector.broadcast %cst_31 : f32 to vector<8x8xf32>
    %79 = arith.subf %78, %77 : vector<8x8xf32>
    %80 = math.exp %79 : vector<8x8xf32>
    %81 = math.log1p %80 : vector<8x8xf32>
    %82 = arith.addf %76, %81 : vector<8x8xf32>
    %83 = arith.subf %72, %82 : vector<8x8xf32>
    %cst_32 = arith.constant dense<0.000000e+00> : vector<8xf32>
    %84 = vector.multi_reduction <add>, %83, %cst_32 [1] : vector<8x8xf32> to vector<8xf32>
    %85 = vector.shape_cast %84 : vector<8xf32> to vector<8x1xf32>
    %86 = arith.subf %70, %85 : vector<8x1xf32>
    %87 = math.tanh %62 : vector<8x8xf32>
    %cst_33 = arith.constant 1.000000e+00 : f32
    %88 = vector.broadcast %cst_33 : f32 to vector<8x8xf32>
    %89 = arith.mulf %88, %87 : vector<8x8xf32>
    %90 = vector.shape_cast %86 : vector<8x1xf32> to vector<8x1xf32>
    %91 = vector.broadcast %90 : vector<8x1xf32> to vector<8x8xf32>
    %92 = tpu.concatenate %89, %91 in 1 : vector<8x8xf32>, vector<8x8xf32> -> vector<8x16xf32>
    %c0_34 = arith.constant 0 : index
    %c0_35 = arith.constant 0 : index
    %93 = vector.load %arg4[%c0_34, %c0_35] : memref<8x16xf32, #tpu.memory_space<vmem>>, vector<8x16xf32>
    tpu.vector_store %arg4[%c0_34, %c0_35], %92 {strides = array<i32>} : memref<8x16xf32, #tpu.memory_space<vmem>>, vector<8x16xf32>,
    return
  }
}

</mosaic_0001>

<llo_original>
// kernel: squashed_actor_forward.1
$region0: #{squashed_actor_forward.1}
  #allocation0 [shape = 'u32[]', space=smem, size = 0x4, offset = 0x4, fixed_abs, tag = 'smem constant byte address 0x4 - core index']
  #allocation1 [shape = 'u32[144,128]{1,0:T(1,128)}', space=vmem, size = 0x12000, scoped, tag = 'internal scratch']
  %s0 = inlined_call_operand.vmem [shape: f32[16,16], index: 0, kind: input, shape index: {}]
  %s1 = inlined_call_operand.vmem [shape: bf16[272,256], index: 1, kind: input, shape index: {}]
  %s2 = inlined_call_operand.hbm [shape: bf16[528,512], index: 2, kind: input, shape index: {}]
  %s3 = inlined_call_operand.vmem [shape: bf16[512,16], index: 3, kind: input, shape index: {}]
  %s4 = inlined_call_operand.vmem [shape: f32[8,16], index: 4, kind: output, shape index: {}]
  %s5 = sld [smem:[#allocation0]]
  $region30: #{squashed_actor_forward.1} parent=0
    _
  %s7 = ssub.s32 1, %s5
  %s8 = scalar_select 0, %s7, %s5
  $region1: #{squashed_actor_forward.1} parent=0
    #allocation2 [shape = 'u8[540672]{0}', space=vmem, size = 0x84000, scoped, tag = 'input window, operand 2, single buffered']
    #allocation3 [shape = 's32[1]{0}', space=sflag, size = 0x4, scoped, tag = 'scoped memory for squashed_actor_forward.1']
    %9 = vsyncpa [#allocation3], 0
    // Predicated region
    $region2: #{squashed_actor_forward.1} parent=1 // pred_check
      _
    $region3: #{squashed_actor_forward.1} parent=1 // pred_check_branch
      %11 = sbr.rel (0) target = $region5
    $region4: #{squashed_actor_forward.1} parent=1 // pred_region
      _
    $region5: #{squashed_actor_forward.1} parent=1 // pred_fallthru
      _
    // Predicated region
    $region6: #{squashed_actor_forward.1} parent=1 // pred_check
      _
    $region7: #{squashed_actor_forward.1} parent=1 // pred_check_branch
      %13 = sbr.rel (0) target = $region9
    $region8: #{squashed_actor_forward.1} parent=1 // pred_region
      _
    $region9: #{squashed_actor_forward.1} parent=1 // pred_fallthru
      _
    // Predicated region
    $region10: #{squashed_actor_forward.1} parent=1 // pred_check
      _
    $region11: #{squashed_actor_forward.1} parent=1 // pred_check_branch
      %15 = sbr.rel (0) target = $region13
    $region12: #{squashed_actor_forward.1} parent=1 // pred_region
      %s17 = ssub.s32 16896, 16896
      %18 = vsyncadd [#allocation3], %s17
      %s19 = sshll.u32 [#allocation2], 4
      %s20 = int_to_ptr.vmem [resolvable:$true] %s19
      %25 = dma.hbm_to_vmem [thread:$0]  %s2, 16896, %s20, [#allocation3], 256, 256, 16
    $region13: #{squashed_actor_forward.1} parent=1 // pred_fallthru
      _
    // Predicated region
    $region14: #{squashed_actor_forward.1} parent=1 // pred_check
      _
    $region15: #{squashed_actor_forward.1} parent=1 // pred_check_branch
      %27 = sbr.rel (0) target = $region17
    $region16: #{squashed_actor_forward.1} parent=1 // pred_region
      _
    $region17: #{squashed_actor_forward.1} parent=1 // pred_fallthru
      _
    // Predicated region
    $region18: #{squashed_actor_forward.1} parent=1 // pred_check
      _
    $region19: #{squashed_actor_forward.1} parent=1 // pred_check_branch
      %29 = sbr.rel (0) target = $region21
    $region20: #{squashed_actor_forward.1} parent=1 // pred_region
      %30 = dma.done [#allocation3], 16896
    $region21: #{squashed_actor_forward.1} parent=1 // pred_fallthru
      _
    %v32 = vld [vmem:[%s0] sm:$0xff]
    %v33 = vld [vmem:[%s0 + $0x8] sm:$0xff]
    %v34 = vld [vmem:[#allocation2 + $0x400] sm:$0xff]
    %v35 = vld [vmem:[#allocation2 + $0x408] sm:$0xff]
    %v36 = vunpack.c.l.bf16 %v34
    %v37 = vunpack.c.h.bf16 %v34
    %v38 = vunpack.c.l.bf16 %v35
    %v39 = vunpack.c.h.bf16 %v35
    %v40 = vld [vmem:[%s1] sm:$0xff]
    %v41 = vld [vmem:[%s1 + $0x8] sm:$0xff]
    %v42 = vpack.c.bf16 %v32, %v32
    %v43 = vlaneseq
    %v44 = vshrl.u32 %v43, 7
    %v45 = vsub.s32 0, %v44
    %v46 = vrot.slane %v36, %v45
    %v47 = vlaneseq
    %v48 = vshrl.u32 %v47, 7
    %v49 = vsub.s32 0, %v48
    %v50 = vrot.slane %v37, %v49
    %v53 = vunpack.c.l.b16 %v40
    %v54 = vunpack.c.h.b16 %v40
    %v55 = vunpack.c.l.b16 %v41
    %v56 = vunpack.c.h.b16 %v41
    %v57 = vpack.c.b16 %v55, %v53
    %v58 = vpack.c.b16 %v56, %v54
    %vm61 = vcmask 130048
    %v63 = vsel %vm61, %v42, 0
    %65 = vmatprep.subr.bf16.mxu0 0
    %66 = vmatpush1.bf16.msra.mxu0 0
    %67 = vmatprep.subr.bf16.mxu0 0
    %68 = vmatpush1.bf16.msra.mxu0 0
    %69 = vmatprep.subr.bf16.mxu0 0
    %70 = vmatpush1.bf16.msra.mxu0 0
    %71 = vmatprep.subr.bf16.mxu0 0
    %72 = vmatpush1.bf16.msra.mxu0 0
    %73 = vmatprep.subr.bf16.mxu0 0
    %74 = vmatpush1.bf16.msra.mxu0 0
    %75 = vmatprep.subr.bf16.mxu0 0
    %76 = vmatpush1.bf16.msra.mxu0 0
    %77 = vmatprep.subr.bf16.mxu0 0
    %78 = vmatpush1.bf16.msra.mxu0 0
    %79 = vmatprep.subr.bf16.mxu0 %v58
    %80 = vmatpush1.bf16.msra.mxu0 %v57
    %81 = vmatprep.subr.bf16.mxu0 0
    %82 = vmatpush2.bf16.msra.mxu0 0
    %83 = vmatprep.subr.bf16.mxu0 0
    %84 = vmatpush2.bf16.msra.mxu0 0
    %85 = vmatprep.subr.bf16.mxu0 0
    %86 = vmatpush2.bf16.msra.mxu0 0
    %87 = vmatprep.subr.bf16.mxu0 0
    %88 = vmatpush2.bf16.msra.mxu0 0
    %89 = vmatprep.subr.bf16.mxu0 0
    %90 = vmatpush2.bf16.msra.mxu0 0
    %91 = vmatprep.subr.bf16.mxu0 0
    %92 = vmatpush2.bf16.msra.mxu0 0
    %93 = vmatprep.subr.bf16.mxu0 0
    %94 = vmatpush2.bf16.msra.mxu0 0
    %95 = vmatprep.subr.bf16.mxu0 0
    %96 = vmatpush2.bf16.msra.mxu0 0
    %97 = vmatprep.mubr.bf16.mxu0 0
    %98 = vmatmul.mubr.bf16.gmra.mxu0 %v63
    %v99 = vpop.f32.mrf.mxu0
    %v100 = vadd.f32 %v46, %v99
    %v101 = vpop.f32.mrf.mxu0
    %v102 = vadd.f32 %v50, %v101
    %v103 = vpop.f32.mrf.mxu0
    %v104 = vpop.f32.mrf.mxu0
    %105 = vdwg.mxu0
    %v106 = vmax.f32 %v100, 0.0
    %v107 = vmax.f32 %v102, 0.0
    %v108 = vld [vmem:[%s1 + $0x10] sm:$0xff]
    %v109 = vld [vmem:[%s1 + $0x18] sm:$0xff]
    %v110 = vld [vmem:[%s1 + $0x20] sm:$0xff]
    %v111 = vld [vmem:[%s1 + $0x28] sm:$0xff]
    %v112 = vld [vmem:[%s1 + $0x30] sm:$0xff]
    %v113 = vld [vmem:[%s1 + $0x38] sm:$0xff]
    %v114 = vld [vmem:[%s1 + $0x40] sm:$0xff]
    %v115 = vld [vmem:[%s1 + $0x48] sm:$0xff]
    %v116 = vld [vmem:[%s1 + $0x50] sm:$0xff]
    %v117 = vld [vmem:[%s1 + $0x58] sm:$0xff]
    %v118 = vld [vmem:[%s1 + $0x60] sm:$0xff]
    %v119 = vld [vmem:[%s1 + $0x68] sm:$0xff]
    %v120 = vld [vmem:[%s1 + $0x70] sm:$0xff]
    %v121 = vld [vmem:[%s1 + $0x78] sm:$0xff]
    %v122 = vld [vmem:[%s1 + $0x80] sm:$0xff]
    %v123 = vld [vmem:[%s1 + $0x88] sm:$0xff]
    %v124 = vld [vmem:[%s1 + $0x90] sm:$0xff]
    %v125 = vld [vmem:[%s1 + $0x98] sm:$0xff]
    %v126 = vld [vmem:[%s1 + $0xa0] sm:$0xff]
    %v127 = vld [vmem:[%s1 + $0xa8] sm:$0xff]
    %v128 = vld [vmem:[%s1 + $0xb0] sm:$0xff]
    %v129 = vld [vmem:[%s1 + $0xb8] sm:$0xff]
    %v130 = vld [vmem:[%s1 + $0xc0] sm:$0xff]
    %v131 = vld [vmem:[%s1 + $0xc8] sm:$0xff]
    %v132 = vld [vmem:[%s1 + $0xd0] sm:$0xff]
    %v133 = vld [vmem:[%s1 + $0xd8] sm:$0xff]
    %v134 = vld [vmem:[%s1 + $0xe0] sm:$0xff]
    %v135 = vld [vmem:[%s1 + $0xe8] sm:$0xff]
    %v136 = vld [vmem:[%s1 + $0xf0] sm:$0xff]
    %v137 = vld [vmem:[%s1 + $0xf8] sm:$0xff]
    %v138 = vld [vmem:[%s1 + $0x100] sm:$0xff]
    %v139 = vld [vmem:[%s1 + $0x108] sm:$0xff]
    %v140 = vpack.c.bf16 %v106, %v106
    %v141 = vpack.c.bf16 %v107, %v107
    %v142 = vlaneseq
    %v143 = vshrl.u32 %v142, 7
    %v144 = vsub.s32 0, %v143
    %v145 = vrot.slane %v38, %v144
    %v146 = vlaneseq
    %v147 = vshrl.u32 %v146, 7
    %v148 = vsub.s32 0, %v147
    %v149 = vrot.slane %v39, %v148
    %v182 = vunpack.c.l.b16 %v108
    %v183 = vunpack.c.h.b16 %v108
    %v184 = vunpack.c.l.b16 %v109
    %v185 = vunpack.c.h.b16 %v109
    %v186 = vunpack.c.l.b16 %v110
    %v187 = vunpack.c.h.b16 %v110
    %v188 = vunpack.c.l.b16 %v111
    %v189 = vunpack.c.h.b16 %v111
    %v190 = vunpack.c.l.b16 %v112
    %v191 = vunpack.c.h.b16 %v112
    %v192 = vunpack.c.l.b16 %v113
    %v193 = vunpack.c.h.b16 %v113
    %v194 = vunpack.c.l.b16 %v114
    %v195 = vunpack.c.h.b16 %v114
    %v196 = vunpack.c.l.b16 %v115
    %v197 = vunpack.c.h.b16 %v115
    %v198 = vunpack.c.l.b16 %v116
    %v199 = vunpack.c.h.b16 %v116
    %v200 = vunpack.c.l.b16 %v117
    %v201 = vunpack.c.h.b16 %v117
    %v202 = vunpack.c.l.b16 %v118
    %v203 = vunpack.c.h.b16 %v118
    %v204 = vunpack.c.l.b16 %v119
    %v205 = vunpack.c.h.b16 %v119
    %v206 = vunpack.c.l.b16 %v120
    %v207 = vunpack.c.h.b16 %v120
    %v208 = vunpack.c.l.b16 %v121
    %v209 = vunpack.c.h.b16 %v121
    %v210 = vunpack.c.l.b16 %v122
    %v211 = vunpack.c.h.b16 %v122
    %v212 = vunpack.c.l.b16 %v123
    %v213 = vunpack.c.h.b16 %v123
    %v214 = vunpack.c.l.b16 %v124
    %v215 = vunpack.c.h.b16 %v124
    %v216 = vunpack.c.l.b16 %v125
    %v217 = vunpack.c.h.b16 %v125
    %v218 = vunpack.c.l.b16 %v126
    %v219 = vunpack.c.h.b16 %v126
    %v220 = vunpack.c.l.b16 %v127
    %v221 = vunpack.c.h.b16 %v127
    %v222 = vunpack.c.l.b16 %v128
    %v223 = vunpack.c.h.b16 %v128
    %v224 = vunpack.c.l.b16 %v129
    %v225 = vunpack.c.h.b16 %v129
    %v226 = vunpack.c.l.b16 %v130
    %v227 = vunpack.c.h.b16 %v130
    %v228 = vunpack.c.l.b16 %v131
    %v229 = vunpack.c.h.b16 %v131
    %v230 = vunpack.c.l.b16 %v132
    %v231 = vunpack.c.h.b16 %v132
    %v232 = vunpack.c.l.b16 %v133
    %v233 = vunpack.c.h.b16 %v133
    %v234 = vunpack.c.l.b16 %v134
    %v235 = vunpack.c.h.b16 %v134
    %v236 = vunpack.c.l.b16 %v135
    %v237 = vunpack.c.h.b16 %v135
    %v238 = vunpack.c.l.b16 %v136
    %v239 = vunpack.c.h.b16 %v136
    %v240 = vunpack.c.l.b16 %v137
    %v241 = vunpack.c.h.b16 %v137
    %v242 = vunpack.c.l.b16 %v138
    %v243 = vunpack.c.h.b16 %v138
    %v244 = vunpack.c.l.b16 %v139
    %v245 = vunpack.c.h.b16 %v139
    %v246 = vpack.c.b16 %v184, %v182
    %v247 = vpack.c.b16 %v185, %v183
    %v248 = vpack.c.b16 %v188, %v186
    %v249 = vpack.c.b16 %v189, %v187
    %v250 = vpack.c.b16 %v192, %v190
    %v251 = vpack.c.b16 %v193, %v191
    %v252 = vpack.c.b16 %v196, %v194
    %v253 = vpack.c.b16 %v197, %v195
    %v254 = vpack.c.b16 %v200, %v198
    %v255 = vpack.c.b16 %v201, %v199
    %v256 = vpack.c.b16 %v204, %v202
    %v257 = vpack.c.b16 %v205, %v203
    %v258 = vpack.c.b16 %v208, %v206
    %v259 = vpack.c.b16 %v209, %v207
    %v260 = vpack.c.b16 %v212, %v210
    %v261 = vpack.c.b16 %v213, %v211
    %v262 = vpack.c.b16 %v216, %v214
    %v263 = vpack.c.b16 %v217, %v215
    %v264 = vpack.c.b16 %v220, %v218
    %v265 = vpack.c.b16 %v221, %v219
    %v266 = vpack.c.b16 %v224, %v222
    %v267 = vpack.c.b16 %v225, %v223
    %v268 = vpack.c.b16 %v228, %v226
    %v269 = vpack.c.b16 %v229, %v227
    %v270 = vpack.c.b16 %v232, %v230
    %v271 = vpack.c.b16 %v233, %v231
    %v272 = vpack.c.b16 %v236, %v234
    %v273 = vpack.c.b16 %v237, %v235
    %v274 = vpack.c.b16 %v240, %v238
    %v275 = vpack.c.b16 %v241, %v239
    %v276 = vpack.c.b16 %v244, %v242
    %v277 = vpack.c.b16 %v245, %v243
    %310 = vmatprep.subr.bf16.mxu0 %v261
    %311 = vmatpush1.bf16.msra.mxu0 %v260
    %312 = vmatprep.subr.bf16.mxu0 %v259
    %313 = vmatpush1.bf16.msra.mxu0 %v258
    %314 = vmatprep.subr.bf16.mxu0 %v257
    %315 = vmatpush1.bf16.msra.mxu0 %v256
    %316 = vmatprep.subr.bf16.mxu0 %v255
    %317 = vmatpush1.bf16.msra.mxu0 %v254
    %318 = vmatprep.subr.bf16.mxu0 %v253
    %319 = vmatpush1.bf16.msra.mxu0 %v252
    %320 = vmatprep.subr.bf16.mxu0 %v251
    %321 = vmatpush1.bf16.msra.mxu0 %v250
    %322 = vmatprep.subr.bf16.mxu0 %v249
    %323 = vmatpush1.bf16.msra.mxu0 %v248
    %324 = vmatprep.subr.bf16.mxu0 %v247
    %325 = vmatpush1.bf16.msra.mxu0 %v246
    %326 = vmatprep.subr.bf16.mxu0 %v277
    %327 = vmatpush2.bf16.msra.mxu0 %v276
    %328 = vmatprep.subr.bf16.mxu0 %v275
    %329 = vmatpush2.bf16.msra.mxu0 %v274
    %330 = vmatprep.subr.bf16.mxu0 %v273
    %331 = vmatpush2.bf16.msra.mxu0 %v272
    %332 = vmatprep.subr.bf16.mxu0 %v271
    %333 = vmatpush2.bf16.msra.mxu0 %v270
    %334 = vmatprep.subr.bf16.mxu0 %v269
    %335 = vmatpush2.bf16.msra.mxu0 %v268
    %336 = vmatprep.subr.bf16.mxu0 %v267
    %337 = vmatpush2.bf16.msra.mxu0 %v266
    %338 = vmatprep.subr.bf16.mxu0 %v265
    %339 = vmatpush2.bf16.msra.mxu0 %v264
    %340 = vmatprep.subr.bf16.mxu0 %v263
    %341 = vmatpush2.bf16.msra.mxu0 %v262
    %342 = vmatprep.mubr.bf16.mxu0 %v141
    %343 = vmatmul.mubr.bf16.gmra.mxu0 %v140
    %v344 = vpop.f32.mrf.mxu0
    %v345 = vadd.f32 %v145, %v344
    %v346 = vpop.f32.mrf.mxu0
    %v347 = vadd.f32 %v149, %v346
    %v348 = vpop.f32.mrf.mxu0
    %v349 = vpop.f32.mrf.mxu0
    %350 = vdwg.mxu0
    %v351 = vmax.f32 %v345, 0.0
    %v352 = vmax.f32 %v347, 0.0
    %v353 = vld [vmem:[#allocation2] sm:$0xff]
    %v354 = vld [vmem:[#allocation2 + $0x8] sm:$0xff]
    %v355 = vld [vmem:[#allocation2 + $0x10] sm:$0xff]
    %v356 = vld [vmem:[#allocation2 + $0x18] sm:$0xff]
    %v357 = vld [vmem:[#allocation2 + $0x20] sm:$0xff]
    %v358 = vld [vmem:[#allocation2 + $0x28] sm:$0xff]
    %v359 = vld [vmem:[#allocation2 + $0x30] sm:$0xff]
    %v360 = vld [vmem:[#allocation2 + $0x38] sm:$0xff]
    %v361 = vld [vmem:[#allocation2 + $0x40] sm:$0xff]
    %v362 = vld [vmem:[#allocation2 + $0x48] sm:$0xff]
    %v363 = vld [vmem:[#allocation2 + $0x50] sm:$0xff]
    %v364 = vld [vmem:[#allocation2 + $0x58] sm:$0xff]
    %v365 = vld [vmem:[#allocation2 + $0x60] sm:$0xff]
    %v366 = vld [vmem:[#allocation2 + $0x68] sm:$0xff]
    %v367 = vld [vmem:[#allocation2 + $0x70] sm:$0xff]
    %v368 = vld [vmem:[#allocation2 + $0x78] sm:$0xff]
    %v369 = vld [vmem:[#allocation2 + $0x80] sm:$0xff]
    %v370 = vld [vmem:[#allocation2 + $0x88] sm:$0xff]
    %v371 = vld [vmem:[#allocation2 + $0x90] sm:$0xff]
    %v372 = vld [vmem:[#allocation2 + $0x98] sm:$0xff]
    %v373 = vld [vmem:[#allocation2 + $0xa0] sm:$0xff]
    %v374 = vld [vmem:[#allocation2 + $0xa8] sm:$0xff]
    %v375 = vld [vmem:[#allocation2 + $0xb0] sm:$0xff]
    %v376 = vld [vmem:[#allocation2 + $0xb8] sm:$0xff]
    %v377 = vld [vmem:[#allocation2 + $0xc0] sm:$0xff]
    %v378 = vld [vmem:[#allocation2 + $0xc8] sm:$0xff]
    %v379 = vld [vmem:[#allocation2 + $0xd0] sm:$0xff]
    %v380 = vld [vmem:[#allocation2 + $0xd8] sm:$0xff]
    %v381 = vld [vmem:[#allocation2 + $0xe0] sm:$0xff]
    %v382 = vld [vmem:[#allocation2 + $0xe8] sm:$0xff]
    %v383 = vld [vmem:[#allocation2 + $0xf0] sm:$0xff]
    %v384 = vld [vmem:[#allocation2 + $0xf8] sm:$0xff]
    %v385 = vld [vmem:[#allocation2 + $0x100] sm:$0xff]
    %v386 = vld [vmem:[#allocation2 + $0x108] sm:$0xff]
    %v387 = vld [vmem:[#allocation2 + $0x110] sm:$0xff]
    %v388 = vld [vmem:[#allocation2 + $0x118] sm:$0xff]
    %v389 = vld [vmem:[#allocation2 + $0x120] sm:$0xff]
    %v390 = vld [vmem:[#allocation2 + $0x128] sm:$0xff]
    %v391 = vld [vmem:[#allocation2 + $0x130] sm:$0xff]
    %v392 = vld [vmem:[#allocation2 + $0x138] sm:$0xff]
    %v393 = vld [vmem:[#allocation2 + $0x140] sm:$0xff]
    %v394 = vld [vmem:[#allocation2 + $0x148] sm:$0xff]
    %v395 = vld [vmem:[#allocation2 + $0x150] sm:$0xff]
    %v396 = vld [vmem:[#allocation2 + $0x158] sm:$0xff]
    %v397 = vld [vmem:[#allocation2 + $0x160] sm:$0xff]
    %v398 = vld [vmem:[#allocation2 + $0x168] sm:$0xff]
    %v399 = vld [vmem:[#allocation2 + $0x170] sm:$0xff]
    %v400 = vld [vmem:[#allocation2 + $0x178] sm:$0xff]
    %v401 = vld [vmem:[#allocation2 + $0x180] sm:$0xff]
    %v402 = vld [vmem:[#allocation2 + $0x188] sm:$0xff]
    %v403 = vld [vmem:[#allocation2 + $0x190] sm:$0xff]
    %v404 = vld [vmem:[#allocation2 + $0x198] sm:$0xff]
    %v405 = vld [vmem:[#allocation2 + $0x1a0] sm:$0xff]
    %v406 = vld [vmem:[#allocation2 + $0x1a8] sm:$0xff]
    %v407 = vld [vmem:[#allocation2 + $0x1b0] sm:$0xff]
    %v408 = vld [vmem:[#allocation2 + $0x1b8] sm:$0xff]
    %v409 = vld [vmem:[#allocation2 + $0x1c0] sm:$0xff]
    %v410 = vld [vmem:[#allocation2 + $0x1c8] sm:$0xff]
    %v411 = vld [vmem:[#allocation2 + $0x1d0] sm:$0xff]
    %v412 = vld [vmem:[#allocation2 + $0x1d8] sm:$0xff]
    %v413 = vld [vmem:[#allocation2 + $0x1e0] sm:$0xff]
    %v414 = vld [vmem:[#allocation2 + $0x1e8] sm:$0xff]
    %v415 = vld [vmem:[#allocation2 + $0x1f0] sm:$0xff]
    %v416 = vld [vmem:[#allocation2 + $0x1f8] sm:$0xff]
    %v417 = vpack.c.bf16 %v351, %v351
    %v418 = vpack.c.bf16 %v352, %v352
    %v419 = vlaneseq
    %v420 = vshrl.u32 %v419, 7
    %v421 = vsub.s32 1, %v420
    %v422 = vrot.slane %v36, %v421
    %v423 = vlaneseq
    %v424 = vshrl.u32 %v423, 7
    %v425 = vsub.s32 1, %v424
    %v426 = vrot.slane %v37, %v425
    %v427 = vlaneseq
    %v428 = vshrl.u32 %v427, 7
    %v429 = vsub.s32 1, %v428
    %v430 = vrot.slane %v38, %v429
    %v431 = vlaneseq
    %v432 = vshrl.u32 %v431, 7
    %v433 = vsub.s32 1, %v432
    %v434 = vrot.slane %v39, %v433
    %v499 = vunpack.c.l.b16 %v353
    %v500 = vunpack.c.h.b16 %v353
    %v501 = vunpack.c.l.b16 %v354
    %v502 = vunpack.c.h.b16 %v354
    %v503 = vunpack.c.l.b16 %v355
    %v504 = vunpack.c.h.b16 %v355
    %v505 = vunpack.c.l.b16 %v356
    %v506 = vunpack.c.h.b16 %v356
    %v507 = vunpack.c.l.b16 %v357
    %v508 = vunpack.c.h.b16 %v357
    %v509 = vunpack.c.l.b16 %v358
    %v510 = vunpack.c.h.b16 %v358
    %v511 = vunpack.c.l.b16 %v359
    %v512 = vunpack.c.h.b16 %v359
    %v513 = vunpack.c.l.b16 %v360
    %v514 = vunpack.c.h.b16 %v360
    %v515 = vunpack.c.l.b16 %v361
    %v516 = vunpack.c.h.b16 %v361
    %v517 = vunpack.c.l.b16 %v362
    %v518 = vunpack.c.h.b16 %v362
    %v519 = vunpack.c.l.b16 %v363
    %v520 = vunpack.c.h.b16 %v363
    %v521 = vunpack.c.l.b16 %v364
    %v522 = vunpack.c.h.b16 %v364
    %v523 = vunpack.c.l.b16 %v365
    %v524 = vunpack.c.h.b16 %v365
    %v525 = vunpack.c.l.b16 %v366
    %v526 = vunpack.c.h.b16 %v366
    %v527 = vunpack.c.l.b16 %v367
    %v528 = vunpack.c.h.b16 %v367
    %v529 = vunpack.c.l.b16 %v368
    %v530 = vunpack.c.h.b16 %v368
    %v531 = vunpack.c.l.b16 %v369
    %v532 = vunpack.c.h.b16 %v369
    %v533 = vunpack.c.l.b16 %v370
    %v534 = vunpack.c.h.b16 %v370
    %v535 = vunpack.c.l.b16 %v371
    %v536 = vunpack.c.h.b16 %v371
    %v537 = vunpack.c.l.b16 %v372
    %v538 = vunpack.c.h.b16 %v372
    %v539 = vunpack.c.l.b16 %v373
    %v540 = vunpack.c.h.b16 %v373
    %v541 = vunpack.c.l.b16 %v374
    %v542 = vunpack.c.h.b16 %v374
    %v543 = vunpack.c.l.b16 %v375
    %v544 = vunpack.c.h.b16 %v375
    %v545 = vunpack.c.l.b16 %v376
    %v546 = vunpack.c.h.b16 %v376
    %v547 = vunpack.c.l.b16 %v377
    %v548 = vunpack.c.h.b16 %v377
    %v549 = vunpack.c.l.b16 %v378
    %v550 = vunpack.c.h.b16 %v378
    %v551 = vunpack.c.l.b16 %v379
    %v552 = vunpack.c.h.b16 %v379
    %v553 = vunpack.c.l.b16 %v380
    %v554 = vunpack.c.h.b16 %v380
    %v555 = vunpack.c.l.b16 %v381
    %v556 = vunpack.c.h.b16 %v381
    %v557 = vunpack.c.l.b16 %v382
    %v558 = vunpack.c.h.b16 %v382
    %v559 = vunpack.c.l.b16 %v383
    %v560 = vunpack.c.h.b16 %v383
    %v561 = vunpack.c.l.b16 %v384
    %v562 = vunpack.c.h.b16 %v384
    %v563 = vunpack.c.l.b16 %v385
    %v564 = vunpack.c.h.b16 %v385
    %v565 = vunpack.c.l.b16 %v386
    %v566 = vunpack.c.h.b16 %v386
    %v567 = vunpack.c.l.b16 %v387
    %v568 = vunpack.c.h.b16 %v387
    %v569 = vunpack.c.l.b16 %v388
    %v570 = vunpack.c.h.b16 %v388
    %v571 = vunpack.c.l.b16 %v389
    %v572 = vunpack.c.h.b16 %v389
    %v573 = vunpack.c.l.b16 %v390
    %v574 = vunpack.c.h.b16 %v390
    %v575 = vunpack.c.l.b16 %v391
    %v576 = vunpack.c.h.b16 %v391
    %v577 = vunpack.c.l.b16 %v392
    %v578 = vunpack.c.h.b16 %v392
    %v579 = vunpack.c.l.b16 %v393
    %v580 = vunpack.c.h.b16 %v393
    %v581 = vunpack.c.l.b16 %v394
    %v582 = vunpack.c.h.b16 %v394
    %v583 = vunpack.c.l.b16 %v395
    %v584 = vunpack.c.h.b16 %v395
    %v585 = vunpack.c.l.b16 %v396
    %v586 = vunpack.c.h.b16 %v396
    %v587 = vunpack.c.l.b16 %v397
    %v588 = vunpack.c.h.b16 %v397
    %v589 = vunpack.c.l.b16 %v398
    %v590 = vunpack.c.h.b16 %v398
    %v591 = vunpack.c.l.b16 %v399
    %v592 = vunpack.c.h.b16 %v399
    %v593 = vunpack.c.l.b16 %v400
    %v594 = vunpack.c.h.b16 %v400
    %v595 = vunpack.c.l.b16 %v401
    %v596 = vunpack.c.h.b16 %v401
    %v597 = vunpack.c.l.b16 %v402
    %v598 = vunpack.c.h.b16 %v402
    %v599 = vunpack.c.l.b16 %v403
    %v600 = vunpack.c.h.b16 %v403
    %v601 = vunpack.c.l.b16 %v404
    %v602 = vunpack.c.h.b16 %v404
    %v603 = vunpack.c.l.b16 %v405
    %v604 = vunpack.c.h.b16 %v405
    %v605 = vunpack.c.l.b16 %v406
    %v606 = vunpack.c.h.b16 %v406
    %v607 = vunpack.c.l.b16 %v407
    %v608 = vunpack.c.h.b16 %v407
    %v609 = vunpack.c.l.b16 %v408
    %v610 = vunpack.c.h.b16 %v408
    %v611 = vunpack.c.l.b16 %v409
    %v612 = vunpack.c.h.b16 %v409
    %v613 = vunpack.c.l.b16 %v410
    %v614 = vunpack.c.h.b16 %v410
    %v615 = vunpack.c.l.b16 %v411
    %v616 = vunpack.c.h.b16 %v411
    %v617 = vunpack.c.l.b16 %v412
    %v618 = vunpack.c.h.b16 %v412
    %v619 = vunpack.c.l.b16 %v413
    %v620 = vunpack.c.h.b16 %v413
    %v621 = vunpack.c.l.b16 %v414
    %v622 = vunpack.c.h.b16 %v414
    %v623 = vunpack.c.l.b16 %v415
    %v624 = vunpack.c.h.b16 %v415
    %v625 = vunpack.c.l.b16 %v416
    %v626 = vunpack.c.h.b16 %v416
    %v627 = vpack.c.b16 %v503, %v499
    %v628 = vpack.c.b16 %v504, %v500
    %v629 = vpack.c.b16 %v505, %v501
    %v630 = vpack.c.b16 %v506, %v502
    %v631 = vpack.c.b16 %v511, %v507
    %v632 = vpack.c.b16 %v512, %v508
    %v633 = vpack.c.b16 %v513, %v509
    %v634 = vpack.c.b16 %v514, %v510
    %v635 = vpack.c.b16 %v519, %v515
    %v636 = vpack.c.b16 %v520, %v516
    %v637 = vpack.c.b16 %v521, %v517
    %v638 = vpack.c.b16 %v522, %v518
    %v639 = vpack.c.b16 %v527, %v523
    %v640 = vpack.c.b16 %v528, %v524
    %v641 = vpack.c.b16 %v529, %v525
    %v642 = vpack.c.b16 %v530, %v526
    %v643 = vpack.c.b16 %v535, %v531
    %v644 = vpack.c.b16 %v536, %v532
    %v645 = vpack.c.b16 %v537, %v533
    %v646 = vpack.c.b16 %v538, %v534
    %v647 = vpack.c.b16 %v543, %v539
    %v648 = vpack.c.b16 %v544, %v540
    %v649 = vpack.c.b16 %v545, %v541
    %v650 = vpack.c.b16 %v546, %v542
    %v651 = vpack.c.b16 %v551, %v547
    %v652 = vpack.c.b16 %v552, %v548
    %v653 = vpack.c.b16 %v553, %v549
    %v654 = vpack.c.b16 %v554, %v550
    %v655 = vpack.c.b16 %v559, %v555
    %v656 = vpack.c.b16 %v560, %v556
    %v657 = vpack.c.b16 %v561, %v557
    %v658 = vpack.c.b16 %v562, %v558
    %v659 = vpack.c.b16 %v567, %v563
    %v660 = vpack.c.b16 %v568, %v564
    %v661 = vpack.c.b16 %v569, %v565
    %v662 = vpack.c.b16 %v570, %v566
    %v663 = vpack.c.b16 %v575, %v571
    %v664 = vpack.c.b16 %v576, %v572
    %v665 = vpack.c.b16 %v577, %v573
    %v666 = vpack.c.b16 %v578, %v574
    %v667 = vpack.c.b16 %v583, %v579
    %v668 = vpack.c.b16 %v584, %v580
    %v669 = vpack.c.b16 %v585, %v581
    %v670 = vpack.c.b16 %v586, %v582
    %v671 = vpack.c.b16 %v591, %v587
    %v672 = vpack.c.b16 %v592, %v588
    %v673 = vpack.c.b16 %v593, %v589
    %v674 = vpack.c.b16 %v594, %v590
    %v675 = vpack.c.b16 %v599, %v595
    %v676 = vpack.c.b16 %v600, %v596
    %v677 = vpack.c.b16 %v601, %v597
    %v678 = vpack.c.b16 %v602, %v598
    %v679 = vpack.c.b16 %v607, %v603
    %v680 = vpack.c.b16 %v608, %v604
    %v681 = vpack.c.b16 %v609, %v605
    %v682 = vpack.c.b16 %v610, %v606
    %v683 = vpack.c.b16 %v615, %v611
    %v684 = vpack.c.b16 %v616, %v612
    %v685 = vpack.c.b16 %v617, %v613
    %v686 = vpack.c.b16 %v618, %v614
    %v687 = vpack.c.b16 %v623, %v619
    %v688 = vpack.c.b16 %v624, %v620
    %v689 = vpack.c.b16 %v625, %v621
    %v690 = vpack.c.b16 %v626, %v622
    %755 = vmatprep.subr.bf16.mxu0 %v656
    %756 = vmatpush1.bf16.msra.mxu0 %v655
    %757 = vmatprep.subr.bf16.mxu0 %v652
    %758 = vmatpush1.bf16.msra.mxu0 %v651
    %759 = vmatprep.subr.bf16.mxu0 %v648
    %760 = vmatpush1.bf16.msra.mxu0 %v647
    %761 = vmatprep.subr.bf16.mxu0 %v644
    %762 = vmatpush1.bf16.msra.mxu0 %v643
    %763 = vmatprep.subr.bf16.mxu0 %v640
    %764 = vmatpush1.bf16.msra.mxu0 %v639
    %765 = vmatprep.subr.bf16.mxu0 %v636
    %766 = vmatpush1.bf16.msra.mxu0 %v635
    %767 = vmatprep.subr.bf16.mxu0 %v632
    %768 = vmatpush1.bf16.msra.mxu0 %v631
    %769 = vmatprep.subr.bf16.mxu0 %v628
    %770 = vmatpush1.bf16.msra.mxu0 %v627
    %771 = vmatprep.subr.bf16.mxu0 %v688
    %772 = vmatpush2.bf16.msra.mxu0 %v687
    %773 = vmatprep.subr.bf16.mxu0 %v684
    %774 = vmatpush2.bf16.msra.mxu0 %v683
    %775 = vmatprep.subr.bf16.mxu0 %v680
    %776 = vmatpush2.bf16.msra.mxu0 %v679
    %777 = vmatprep.subr.bf16.mxu0 %v676
    %778 = vmatpush2.bf16.msra.mxu0 %v675
    %779 = vmatprep.subr.bf16.mxu0 %v672
    %780 = vmatpush2.bf16.msra.mxu0 %v671
    %781 = vmatprep.subr.bf16.mxu0 %v668
    %782 = vmatpush2.bf16.msra.mxu0 %v667
    %783 = vmatprep.subr.bf16.mxu0 %v664
    %784 = vmatpush2.bf16.msra.mxu0 %v663
    %785 = vmatprep.subr.bf16.mxu0 %v660
    %786 = vmatpush2.bf16.msra.mxu0 %v659
    %787 = vmatprep.mubr.bf16.mxu0 %v418
    %788 = vmatmul.mubr.bf16.gmra.mxu0 %v417
    %v789 = vpop.f32.mrf.mxu0
    %v790 = vadd.f32 %v422, %v789
    %v791 = vpop.f32.mrf.mxu0
    %v792 = vadd.f32 %v426, %v791
    %v793 = vpop.f32.mrf.mxu0
    %v794 = vpop.f32.mrf.mxu0
    %795 = vdwg.mxu0
    %796 = vmatprep.subr.bf16.mxu0 %v658
    %797 = vmatpush1.bf16.msra.mxu0 %v657
    %798 = vmatprep.subr.bf16.mxu0 %v654
    %799 = vmatpush1.bf16.msra.mxu0 %v653
    %800 = vmatprep.subr.bf16.mxu0 %v650
    %801 = vmatpush1.bf16.msra.mxu0 %v649
    %802 = vmatprep.subr.bf16.mxu0 %v646
    %803 = vmatpush1.bf16.msra.mxu0 %v645
    %804 = vmatprep.subr.bf16.mxu0 %v642
    %805 = vmatpush1.bf16.msra.mxu0 %v641
    %806 = vmatprep.subr.bf16.mxu0 %v638
    %807 = vmatpush1.bf16.msra.mxu0 %v637
    %808 = vmatprep.subr.bf16.mxu0 %v634
    %809 = vmatpush1.bf16.msra.mxu0 %v633
    %810 = vmatprep.subr.bf16.mxu0 %v630
    %811 = vmatpush1.bf16.msra.mxu0 %v629
    %812 = vmatprep.subr.bf16.mxu0 %v690
    %813 = vmatpush2.bf16.msra.mxu0 %v689
    %814 = vmatprep.subr.bf16.mxu0 %v686
    %815 = vmatpush2.bf16.msra.mxu0 %v685
    %816 = vmatprep.subr.bf16.mxu0 %v682
    %817 = vmatpush2.bf16.msra.mxu0 %v681
    %818 = vmatprep.subr.bf16.mxu0 %v678
    %819 = vmatpush2.bf16.msra.mxu0 %v677
    %820 = vmatprep.subr.bf16.mxu0 %v674
    %821 = vmatpush2.bf16.msra.mxu0 %v673
    %822 = vmatprep.subr.bf16.mxu0 %v670
    %823 = vmatpush2.bf16.msra.mxu0 %v669
    %824 = vmatprep.subr.bf16.mxu0 %v666
    %825 = vmatpush2.bf16.msra.mxu0 %v665
    %826 = vmatprep.subr.bf16.mxu0 %v662
    %827 = vmatpush2.bf16.msra.mxu0 %v661
    %828 = vmatprep.mubr.bf16.mxu0 %v418
    %829 = vmatmul.mubr.bf16.gmra.mxu0 %v417
    %v830 = vpop.f32.mrf.mxu0
    %v831 = vadd.f32 %v430, %v830
    %v832 = vpop.f32.mrf.mxu0
    %v833 = vadd.f32 %v434, %v832
    %v834 = vpop.f32.mrf.mxu0
    %v835 = vpop.f32.mrf.mxu0
    %836 = vdwg.mxu0
    %v837 = vmax.f32 %v790, 0.0
    %v838 = vmax.f32 %v792, 0.0
    %v839 = vmax.f32 %v831, 0.0
    %v840 = vmax.f32 %v833, 0.0
    %v841 = vld [vmem:[#allocation2 + $0x200] sm:$0xff]
    %v842 = vld [vmem:[#allocation2 + $0x210] sm:$0xff]
    %v843 = vld [vmem:[#allocation2 + $0x220] sm:$0xff]
    %v844 = vld [vmem:[#allocation2 + $0x230] sm:$0xff]
    %v845 = vld [vmem:[#allocation2 + $0x240] sm:$0xff]
    %v846 = vld [vmem:[#allocation2 + $0x250] sm:$0xff]
    %v847 = vld [vmem:[#allocation2 + $0x260] sm:$0xff]
    %v848 = vld [vmem:[#allocation2 + $0x270] sm:$0xff]
    %v849 = vld [vmem:[#allocation2 + $0x280] sm:$0xff]
    %v850 = vld [vmem:[#allocation2 + $0x290] sm:$0xff]
    %v851 = vld [vmem:[#allocation2 + $0x2a0] sm:$0xff]
    %v852 = vld [vmem:[#allocation2 + $0x2b0] sm:$0xff]
    %v853 = vld [vmem:[#allocation2 + $0x2c0] sm:$0xff]
    %v854 = vld [vmem:[#allocation2 + $0x2d0] sm:$0xff]
    %v855 = vld [vmem:[#allocation2 + $0x2e0] sm:$0xff]
    %v856 = vld [vmem:[#allocation2 + $0x2f0] sm:$0xff]
    %v857 = vld [vmem:[#allocation2 + $0x300] sm:$0xff]
    %v858 = vld [vmem:[#allocation2 + $0x310] sm:$0xff]
    %v859 = vld [vmem:[#allocation2 + $0x320] sm:$0xff]
    %v860 = vld [vmem:[#allocation2 + $0x330] sm:$0xff]
    %v861 = vld [vmem:[#allocation2 + $0x340] sm:$0xff]
    %v862 = vld [vmem:[#allocation2 + $0x350] sm:$0xff]
    %v863 = vld [vmem:[#allocation2 + $0x360] sm:$0xff]
    %v864 = vld [vmem:[#allocation2 + $0x370] sm:$0xff]
    %v865 = vld [vmem:[#allocation2 + $0x380] sm:$0xff]
    %v866 = vld [vmem:[#allocation2 + $0x390] sm:$0xff]
    %v867 = vld [vmem:[#allocation2 + $0x3a0] sm:$0xff]
    %v868 = vld [vmem:[#allocation2 + $0x3b0] sm:$0xff]
    %v869 = vld [vmem:[#allocation2 + $0x3c0] sm:$0xff]
    %v870 = vld [vmem:[#allocation2 + $0x3d0] sm:$0xff]
    %v871 = vld [vmem:[#allocation2 + $0x3e0] sm:$0xff]
    %v872 = vld [vmem:[#allocation2 + $0x3f0] sm:$0xff]
    %v873 = vpack.c.bf16 %v837, %v837
    %v874 = vpack.c.bf16 %v838, %v838
    %v875 = vlaneseq
    %v876 = vshrl.u32 %v875, 7
    %v877 = vsub.s32 2, %v876
    %v878 = vrot.slane %v36, %v877
    %v879 = vlaneseq
    %v880 = vshrl.u32 %v879, 7
    %v881 = vsub.s32 2, %v880
    %v882 = vrot.slane %v37, %v881
    %v915 = vunpack.c.l.b16 %v841
    %v916 = vunpack.c.h.b16 %v841
    %v917 = vunpack.c.l.b16 %v842
    %v918 = vunpack.c.h.b16 %v842
    %v919 = vunpack.c.l.b16 %v843
    %v920 = vunpack.c.h.b16 %v843
    %v921 = vunpack.c.l.b16 %v844
    %v922 = vunpack.c.h.b16 %v844
    %v923 = vunpack.c.l.b16 %v845
    %v924 = vunpack.c.h.b16 %v845
    %v925 = vunpack.c.l.b16 %v846
    %v926 = vunpack.c.h.b16 %v846
    %v927 = vunpack.c.l.b16 %v847
    %v928 = vunpack.c.h.b16 %v847
    %v929 = vunpack.c.l.b16 %v848
    %v930 = vunpack.c.h.b16 %v848
    %v931 = vunpack.c.l.b16 %v849
    %v932 = vunpack.c.h.b16 %v849
    %v933 = vunpack.c.l.b16 %v850
    %v934 = vunpack.c.h.b16 %v850
    %v935 = vunpack.c.l.b16 %v851
    %v936 = vunpack.c.h.b16 %v851
    %v937 = vunpack.c.l.b16 %v852
    %v938 = vunpack.c.h.b16 %v852
    %v939 = vunpack.c.l.b16 %v853
    %v940 = vunpack.c.h.b16 %v853
    %v941 = vunpack.c.l.b16 %v854
    %v942 = vunpack.c.h.b16 %v854
    %v943 = vunpack.c.l.b16 %v855
    %v944 = vunpack.c.h.b16 %v855
    %v945 = vunpack.c.l.b16 %v856
    %v946 = vunpack.c.h.b16 %v856
    %v947 = vunpack.c.l.b16 %v857
    %v948 = vunpack.c.h.b16 %v857
    %v949 = vunpack.c.l.b16 %v858
    %v950 = vunpack.c.h.b16 %v858
    %v951 = vunpack.c.l.b16 %v859
    %v952 = vunpack.c.h.b16 %v859
    %v953 = vunpack.c.l.b16 %v860
    %v954 = vunpack.c.h.b16 %v860
    %v955 = vunpack.c.l.b16 %v861
    %v956 = vunpack.c.h.b16 %v861
    %v957 = vunpack.c.l.b16 %v862
    %v958 = vunpack.c.h.b16 %v862
    %v959 = vunpack.c.l.b16 %v863
    %v960 = vunpack.c.h.b16 %v863
    %v961 = vunpack.c.l.b16 %v864
    %v962 = vunpack.c.h.b16 %v864
    %v963 = vunpack.c.l.b16 %v865
    %v964 = vunpack.c.h.b16 %v865
    %v965 = vunpack.c.l.b16 %v866
    %v966 = vunpack.c.h.b16 %v866
    %v967 = vunpack.c.l.b16 %v867
    %v968 = vunpack.c.h.b16 %v867
    %v969 = vunpack.c.l.b16 %v868
    %v970 = vunpack.c.h.b16 %v868
    %v971 = vunpack.c.l.b16 %v869
    %v972 = vunpack.c.h.b16 %v869
    %v973 = vunpack.c.l.b16 %v870
    %v974 = vunpack.c.h.b16 %v870
    %v975 = vunpack.c.l.b16 %v871
    %v976 = vunpack.c.h.b16 %v871
    %v977 = vunpack.c.l.b16 %v872
    %v978 = vunpack.c.h.b16 %v872
    %v979 = vpack.c.b16 %v917, %v915
    %v980 = vpack.c.b16 %v918, %v916
    %v981 = vpack.c.b16 %v921, %v919
    %v982 = vpack.c.b16 %v922, %v920
    %v983 = vpack.c.b16 %v925, %v923
    %v984 = vpack.c.b16 %v926, %v924
    %v985 = vpack.c.b16 %v929, %v927
    %v986 = vpack.c.b16 %v930, %v928
    %v987 = vpack.c.b16 %v933, %v931
    %v988 = vpack.c.b16 %v934, %v932
    %v989 = vpack.c.b16 %v937, %v935
    %v990 = vpack.c.b16 %v938, %v936
    %v991 = vpack.c.b16 %v941, %v939
    %v992 = vpack.c.b16 %v942, %v940
    %v993 = vpack.c.b16 %v945, %v943
    %v994 = vpack.c.b16 %v946, %v944
    %v995 = vpack.c.b16 %v949, %v947
    %v996 = vpack.c.b16 %v950, %v948
    %v997 = vpack.c.b16 %v953, %v951
    %v998 = vpack.c.b16 %v954, %v952
    %v999 = vpack.c.b16 %v957, %v955
    %v1000 = vpack.c.b16 %v958, %v956
    %v1001 = vpack.c.b16 %v961, %v959
    %v1002 = vpack.c.b16 %v962, %v960
    %v1003 = vpack.c.b16 %v965, %v963
    %v1004 = vpack.c.b16 %v966, %v964
    %v1005 = vpack.c.b16 %v969, %v967
    %v1006 = vpack.c.b16 %v970, %v968
    %v1007 = vpack.c.b16 %v973, %v971
    %v1008 = vpack.c.b16 %v974, %v972
    %v1009 = vpack.c.b16 %v977, %v975
    %v1010 = vpack.c.b16 %v978, %v976
    %1043 = vmatprep.subr.bf16.mxu0 %v994
    %1044 = vmatpush1.bf16.msra.mxu0 %v993
    %1045 = vmatprep.subr.bf16.mxu0 %v992
    %1046 = vmatpush1.bf16.msra.mxu0 %v991
    %1047 = vmatprep.subr.bf16.mxu0 %v990
    %1048 = vmatpush1.bf16.msra.mxu0 %v989
    %1049 = vmatprep.subr.bf16.mxu0 %v988
    %1050 = vmatpush1.bf16.msra.mxu0 %v987
    %1051 = vmatprep.subr.bf16.mxu0 %v986
    %1052 = vmatpush1.bf16.msra.mxu0 %v985
    %1053 = vmatprep.subr.bf16.mxu0 %v984
    %1054 = vmatpush1.bf16.msra.mxu0 %v983
    %1055 = vmatprep.subr.bf16.mxu0 %v982
    %1056 = vmatpush1.bf16.msra.mxu0 %v981
    %1057 = vmatprep.subr.bf16.mxu0 %v980
    %1058 = vmatpush1.bf16.msra.mxu0 %v979
    %1059 = vmatprep.subr.bf16.mxu0 %v1010
    %1060 = vmatpush2.bf16.msra.mxu0 %v1009
    %1061 = vmatprep.subr.bf16.mxu0 %v1008
    %1062 = vmatpush2.bf16.msra.mxu0 %v1007
    %1063 = vmatprep.subr.bf16.mxu0 %v1006
    %1064 = vmatpush2.bf16.msra.mxu0 %v1005
    %1065 = vmatprep.subr.bf16.mxu0 %v1004
    %1066 = vmatpush2.bf16.msra.mxu0 %v1003
    %1067 = vmatprep.subr.bf16.mxu0 %v1002
    %1068 = vmatpush2.bf16.msra.mxu0 %v1001
    %1069 = vmatprep.subr.bf16.mxu0 %v1000
    %1070 = vmatpush2.bf16.msra.mxu0 %v999
    %1071 = vmatprep.subr.bf16.mxu0 %v998
    %1072 = vmatpush2.bf16.msra.mxu0 %v997
    %1073 = vmatprep.subr.bf16.mxu0 %v996
    %1074 = vmatpush2.bf16.msra.mxu0 %v995
    %1075 = vmatprep.mubr.bf16.mxu0 %v874
    %1076 = vmatmul.mubr.bf16.gmra.mxu0 %v873
    %v1077 = vpop.f32.mrf.mxu0
    %v1078 = vadd.f32 %v878, %v1077
    %v1079 = vpop.f32.mrf.mxu0
    %v1080 = vadd.f32 %v882, %v1079
    %v1081 = vpop.f32.mrf.mxu0
    %v1082 = vpop.f32.mrf.mxu0
    %1083 = vdwg.mxu0
    %v1084 = vmax.f32 %v1078, 0.0
    %v1085 = vmax.f32 %v1080, 0.0
    %v1086 = vld [vmem:[#allocation2 + $0x208] sm:$0xff]
    %v1087 = vld [vmem:[#allocation2 + $0x218] sm:$0xff]
    %v1088 = vld [vmem:[#allocation2 + $0x228] sm:$0xff]
    %v1089 = vld [vmem:[#allocation2 + $0x238] sm:$0xff]
    %v1090 = vld [vmem:[#allocation2 + $0x248] sm:$0xff]
    %v1091 = vld [vmem:[#allocation2 + $0x258] sm:$0xff]
    %v1092 = vld [vmem:[#allocation2 + $0x268] sm:$0xff]
    %v1093 = vld [vmem:[#allocation2 + $0x278] sm:$0xff]
    %v1094 = vld [vmem:[#allocation2 + $0x288] sm:$0xff]
    %v1095 = vld [vmem:[#allocation2 + $0x298] sm:$0xff]
    %v1096 = vld [vmem:[#allocation2 + $0x2a8] sm:$0xff]
    %v1097 = vld [vmem:[#allocation2 + $0x2b8] sm:$0xff]
    %v1098 = vld [vmem:[#allocation2 + $0x2c8] sm:$0xff]
    %v1099 = vld [vmem:[#allocation2 + $0x2d8] sm:$0xff]
    %v1100 = vld [vmem:[#allocation2 + $0x2e8] sm:$0xff]
    %v1101 = vld [vmem:[#allocation2 + $0x2f8] sm:$0xff]
    %v1102 = vld [vmem:[#allocation2 + $0x308] sm:$0xff]
    %v1103 = vld [vmem:[#allocation2 + $0x318] sm:$0xff]
    %v1104 = vld [vmem:[#allocation2 + $0x328] sm:$0xff]
    %v1105 = vld [vmem:[#allocation2 + $0x338] sm:$0xff]
    %v1106 = vld [vmem:[#allocation2 + $0x348] sm:$0xff]
    %v1107 = vld [vmem:[#allocation2 + $0x358] sm:$0xff]
    %v1108 = vld [vmem:[#allocation2 + $0x368] sm:$0xff]
    %v1109 = vld [vmem:[#allocation2 + $0x378] sm:$0xff]
    %v1110 = vld [vmem:[#allocation2 + $0x388] sm:$0xff]
    %v1111 = vld [vmem:[#allocation2 + $0x398] sm:$0xff]
    %v1112 = vld [vmem:[#allocation2 + $0x3a8] sm:$0xff]
    %v1113 = vld [vmem:[#allocation2 + $0x3b8] sm:$0xff]
    %v1114 = vld [vmem:[#allocation2 + $0x3c8] sm:$0xff]
    %v1115 = vld [vmem:[#allocation2 + $0x3d8] sm:$0xff]
    %v1116 = vld [vmem:[#allocation2 + $0x3e8] sm:$0xff]
    %v1117 = vld [vmem:[#allocation2 + $0x3f8] sm:$0xff]
    %v1118 = vpack.c.bf16 %v839, %v839
    %v1119 = vpack.c.bf16 %v840, %v840
    %v1120 = vlaneseq
    %v1121 = vshrl.u32 %v1120, 7
    %v1122 = vsub.s32 2, %v1121
    %v1123 = vrot.slane %v38, %v1122
    %v1124 = vlaneseq
    %v1125 = vshrl.u32 %v1124, 7
    %v1126 = vsub.s32 2, %v1125
    %v1127 = vrot.slane %v39, %v1126
    %v1160 = vunpack.c.l.b16 %v1086
    %v1161 = vunpack.c.h.b16 %v1086
    %v1162 = vunpack.c.l.b16 %v1087
    %v1163 = vunpack.c.h.b16 %v1087
    %v1164 = vunpack.c.l.b16 %v1088
    %v1165 = vunpack.c.h.b16 %v1088
    %v1166 = vunpack.c.l.b16 %v1089
    %v1167 = vunpack.c.h.b16 %v1089
    %v1168 = vunpack.c.l.b16 %v1090
    %v1169 = vunpack.c.h.b16 %v1090
    %v1170 = vunpack.c.l.b16 %v1091
    %v1171 = vunpack.c.h.b16 %v1091
    %v1172 = vunpack.c.l.b16 %v1092
    %v1173 = vunpack.c.h.b16 %v1092
    %v1174 = vunpack.c.l.b16 %v1093
    %v1175 = vunpack.c.h.b16 %v1093
    %v1176 = vunpack.c.l.b16 %v1094
    %v1177 = vunpack.c.h.b16 %v1094
    %v1178 = vunpack.c.l.b16 %v1095
    %v1179 = vunpack.c.h.b16 %v1095
    %v1180 = vunpack.c.l.b16 %v1096
    %v1181 = vunpack.c.h.b16 %v1096
    %v1182 = vunpack.c.l.b16 %v1097
    %v1183 = vunpack.c.h.b16 %v1097
    %v1184 = vunpack.c.l.b16 %v1098
    %v1185 = vunpack.c.h.b16 %v1098
    %v1186 = vunpack.c.l.b16 %v1099
    %v1187 = vunpack.c.h.b16 %v1099
    %v1188 = vunpack.c.l.b16 %v1100
    %v1189 = vunpack.c.h.b16 %v1100
    %v1190 = vunpack.c.l.b16 %v1101
    %v1191 = vunpack.c.h.b16 %v1101
    %v1192 = vunpack.c.l.b16 %v1102
    %v1193 = vunpack.c.h.b16 %v1102
    %v1194 = vunpack.c.l.b16 %v1103
    %v1195 = vunpack.c.h.b16 %v1103
    %v1196 = vunpack.c.l.b16 %v1104
    %v1197 = vunpack.c.h.b16 %v1104
    %v1198 = vunpack.c.l.b16 %v1105
    %v1199 = vunpack.c.h.b16 %v1105
    %v1200 = vunpack.c.l.b16 %v1106
    %v1201 = vunpack.c.h.b16 %v1106
    %v1202 = vunpack.c.l.b16 %v1107
    %v1203 = vunpack.c.h.b16 %v1107
    %v1204 = vunpack.c.l.b16 %v1108
    %v1205 = vunpack.c.h.b16 %v1108
    %v1206 = vunpack.c.l.b16 %v1109
    %v1207 = vunpack.c.h.b16 %v1109
    %v1208 = vunpack.c.l.b16 %v1110
    %v1209 = vunpack.c.h.b16 %v1110
    %v1210 = vunpack.c.l.b16 %v1111
    %v1211 = vunpack.c.h.b16 %v1111
    %v1212 = vunpack.c.l.b16 %v1112
    %v1213 = vunpack.c.h.b16 %v1112
    %v1214 = vunpack.c.l.b16 %v1113
    %v1215 = vunpack.c.h.b16 %v1113
    %v1216 = vunpack.c.l.b16 %v1114
    %v1217 = vunpack.c.h.b16 %v1114
    %v1218 = vunpack.c.l.b16 %v1115
    %v1219 = vunpack.c.h.b16 %v1115
    %v1220 = vunpack.c.l.b16 %v1116
    %v1221 = vunpack.c.h.b16 %v1116
    %v1222 = vunpack.c.l.b16 %v1117
    %v1223 = vunpack.c.h.b16 %v1117
    %v1224 = vpack.c.b16 %v1162, %v1160
    %v1225 = vpack.c.b16 %v1163, %v1161
    %v1226 = vpack.c.b16 %v1166, %v1164
    %v1227 = vpack.c.b16 %v1167, %v1165
    %v1228 = vpack.c.b16 %v1170, %v1168
    %v1229 = vpack.c.b16 %v1171, %v1169
    %v1230 = vpack.c.b16 %v1174, %v1172
    %v1231 = vpack.c.b16 %v1175, %v1173
    %v1232 = vpack.c.b16 %v1178, %v1176
    %v1233 = vpack.c.b16 %v1179, %v1177
    %v1234 = vpack.c.b16 %v1182, %v1180
    %v1235 = vpack.c.b16 %v1183, %v1181
    %v1236 = vpack.c.b16 %v1186, %v1184
    %v1237 = vpack.c.b16 %v1187, %v1185
    %v1238 = vpack.c.b16 %v1190, %v1188
    %v1239 = vpack.c.b16 %v1191, %v1189
    %v1240 = vpack.c.b16 %v1194, %v1192
    %v1241 = vpack.c.b16 %v1195, %v1193
    %v1242 = vpack.c.b16 %v1198, %v1196
    %v1243 = vpack.c.b16 %v1199, %v1197
    %v1244 = vpack.c.b16 %v1202, %v1200
    %v1245 = vpack.c.b16 %v1203, %v1201
    %v1246 = vpack.c.b16 %v1206, %v1204
    %v1247 = vpack.c.b16 %v1207, %v1205
    %v1248 = vpack.c.b16 %v1210, %v1208
    %v1249 = vpack.c.b16 %v1211, %v1209
    %v1250 = vpack.c.b16 %v1214, %v1212
    %v1251 = vpack.c.b16 %v1215, %v1213
    %v1252 = vpack.c.b16 %v1218, %v1216
    %v1253 = vpack.c.b16 %v1219, %v1217
    %v1254 = vpack.c.b16 %v1222, %v1220
    %v1255 = vpack.c.b16 %v1223, %v1221
    %1288 = vmatprep.subr.bf16.mxu0 %v1239
    %1289 = vmatpush1.bf16.msra.mxu0 %v1238
    %1290 = vmatprep.subr.bf16.mxu0 %v1237
    %1291 = vmatpush1.bf16.msra.mxu0 %v1236
    %1292 = vmatprep.subr.bf16.mxu0 %v1235
    %1293 = vmatpush1.bf16.msra.mxu0 %v1234
    %1294 = vmatprep.subr.bf16.mxu0 %v1233
    %1295 = vmatpush1.bf16.msra.mxu0 %v1232
    %1296 = vmatprep.subr.bf16.mxu0 %v1231
    %1297 = vmatpush1.bf16.msra.mxu0 %v1230
    %1298 = vmatprep.subr.bf16.mxu0 %v1229
    %1299 = vmatpush1.bf16.msra.mxu0 %v1228
    %1300 = vmatprep.subr.bf16.mxu0 %v1227
    %1301 = vmatpush1.bf16.msra.mxu0 %v1226
    %1302 = vmatprep.subr.bf16.mxu0 %v1225
    %1303 = vmatpush1.bf16.msra.mxu0 %v1224
    %1304 = vmatprep.subr.bf16.mxu0 %v1255
    %1305 = vmatpush2.bf16.msra.mxu0 %v1254
    %1306 = vmatprep.subr.bf16.mxu0 %v1253
    %1307 = vmatpush2.bf16.msra.mxu0 %v1252
    %1308 = vmatprep.subr.bf16.mxu0 %v1251
    %1309 = vmatpush2.bf16.msra.mxu0 %v1250
    %1310 = vmatprep.subr.bf16.mxu0 %v1249
    %1311 = vmatpush2.bf16.msra.mxu0 %v1248
    %1312 = vmatprep.subr.bf16.mxu0 %v1247
    %1313 = vmatpush2.bf16.msra.mxu0 %v1246
    %1314 = vmatprep.subr.bf16.mxu0 %v1245
    %1315 = vmatpush2.bf16.msra.mxu0 %v1244
    %1316 = vmatprep.subr.bf16.mxu0 %v1243
    %1317 = vmatpush2.bf16.msra.mxu0 %v1242
    %1318 = vmatprep.subr.bf16.mxu0 %v1241
    %1319 = vmatpush2.bf16.msra.mxu0 %v1240
    %1320 = vmatprep.mubr.bf16.mxu0 %v1119
    %1321 = vmatmul.mubr.bf16.gmra.mxu0 %v1118
    %v1322 = vpop.f32.mrf.mxu0
    %v1323 = vadd.f32 %v1123, %v1322
    %v1324 = vpop.f32.mrf.mxu0
    %v1325 = vadd.f32 %v1127, %v1324
    %v1326 = vpop.f32.mrf.mxu0
    %v1327 = vpop.f32.mrf.mxu0
    %1328 = vdwg.mxu0
    %v1329 = vmax.f32 %v1323, 0.0
    %v1330 = vmax.f32 %v1325, 0.0
    %v1331 = vld [vmem:[%s3] sm:$0xf]
    %v1332 = vld [vmem:[%s3 + $0x4] sm:$0xf]
    %v1333 = vld [vmem:[%s3 + $0x8] sm:$0xf]
    %v1334 = vld [vmem:[%s3 + $0xc] sm:$0xf]
    %v1335 = vld [vmem:[%s3 + $0x10] sm:$0xf]
    %v1336 = vld [vmem:[%s3 + $0x14] sm:$0xf]
    %v1337 = vld [vmem:[%s3 + $0x18] sm:$0xf]
    %v1338 = vld [vmem:[%s3 + $0x1c] sm:$0xf]
    %v1339 = vld [vmem:[%s3 + $0x20] sm:$0xf]
    %v1340 = vld [vmem:[%s3 + $0x24] sm:$0xf]
    %v1341 = vld [vmem:[%s3 + $0x28] sm:$0xf]
    %v1342 = vld [vmem:[%s3 + $0x2c] sm:$0xf]
    %v1343 = vld [vmem:[%s3 + $0x30] sm:$0xf]
    %v1344 = vld [vmem:[%s3 + $0x34] sm:$0xf]
    %v1345 = vld [vmem:[%s3 + $0x38] sm:$0xf]
    %v1346 = vld [vmem:[%s3 + $0x3c] sm:$0xf]
    %v1347 = vld [vmem:[%s3 + $0x40] sm:$0xf]
    %v1348 = vld [vmem:[%s3 + $0x44] sm:$0xf]
    %v1349 = vld [vmem:[%s3 + $0x48] sm:$0xf]
    %v1350 = vld [vmem:[%s3 + $0x4c] sm:$0xf]
    %v1351 = vld [vmem:[%s3 + $0x50] sm:$0xf]
    %v1352 = vld [vmem:[%s3 + $0x54] sm:$0xf]
    %v1353 = vld [vmem:[%s3 + $0x58] sm:$0xf]
    %v1354 = vld [vmem:[%s3 + $0x5c] sm:$0xf]
    %v1355 = vld [vmem:[%s3 + $0x60] sm:$0xf]
    %v1356 = vld [vmem:[%s3 + $0x64] sm:$0xf]
    %v1357 = vld [vmem:[%s3 + $0x68] sm:$0xf]
    %v1358 = vld [vmem:[%s3 + $0x6c] sm:$0xf]
    %v1359 = vld [vmem:[%s3 + $0x70] sm:$0xf]
    %v1360 = vld [vmem:[%s3 + $0x74] sm:$0xf]
    %v1361 = vld [vmem:[%s3 + $0x78] sm:$0xf]
    %v1362 = vld [vmem:[%s3 + $0x7c] sm:$0xf]
    %v1363 = vld [vmem:[%s3 + $0x80] sm:$0xf]
    %v1364 = vld [vmem:[%s3 + $0x84] sm:$0xf]
    %v1365 = vld [vmem:[%s3 + $0x88] sm:$0xf]
    %v1366 = vld [vmem:[%s3 + $0x8c] sm:$0xf]
    %v1367 = vld [vmem:[%s3 + $0x90] sm:$0xf]
    %v1368 = vld [vmem:[%s3 + $0x94] sm:$0xf]
    %v1369 = vld [vmem:[%s3 + $0x98] sm:$0xf]
    %v1370 = vld [vmem:[%s3 + $0x9c] sm:$0xf]
    %v1371 = vld [vmem:[%s3 + $0xa0] sm:$0xf]
    %v1372 = vld [vmem:[%s3 + $0xa4] sm:$0xf]
    %v1373 = vld [vmem:[%s3 + $0xa8] sm:$0xf]
    %v1374 = vld [vmem:[%s3 + $0xac] sm:$0xf]
    %v1375 = vld [vmem:[%s3 + $0xb0] sm:$0xf]
    %v1376 = vld [vmem:[%s3 + $0xb4] sm:$0xf]
    %v1377 = vld [vmem:[%s3 + $0xb8] sm:$0xf]
    %v1378 = vld [vmem:[%s3 + $0xbc] sm:$0xf]
    %v1379 = vld [vmem:[%s3 + $0xc0] sm:$0xf]
    %v1380 = vld [vmem:[%s3 + $0xc4] sm:$0xf]
    %v1381 = vld [vmem:[%s3 + $0xc8] sm:$0xf]
    %v1382 = vld [vmem:[%s3 + $0xcc] sm:$0xf]
    %v1383 = vld [vmem:[%s3 + $0xd0] sm:$0xf]
    %v1384 = vld [vmem:[%s3 + $0xd4] sm:$0xf]
    %v1385 = vld [vmem:[%s3 + $0xd8] sm:$0xf]
    %v1386 = vld [vmem:[%s3 + $0xdc] sm:$0xf]
    %v1387 = vld [vmem:[%s3 + $0xe0] sm:$0xf]
    %v1388 = vld [vmem:[%s3 + $0xe4] sm:$0xf]
    %v1389 = vld [vmem:[%s3 + $0xe8] sm:$0xf]
    %v1390 = vld [vmem:[%s3 + $0xec] sm:$0xf]
    %v1391 = vld [vmem:[%s3 + $0xf0] sm:$0xf]
    %v1392 = vld [vmem:[%s3 + $0xf4] sm:$0xf]
    %v1393 = vld [vmem:[%s3 + $0xf8] sm:$0xf]
    %v1394 = vld [vmem:[%s3 + $0xfc] sm:$0xf]
    %v1395 = vpack.c.bf16 %v1084, %v1084
    %v1396 = vpack.c.bf16 %v1085, %v1085
    %v1397 = vpack.c.bf16 %v1329, %v1329
    %v1398 = vpack.c.bf16 %v1330, %v1330
    %v1399 = vlaneseq
    %v1400 = vshrl.u32 %v1399, 7
    %v1401 = vsub.s32 3, %v1400
    %v1402 = vrot.slane %v36, %v1401
    %v1467 = vunpack.c.l.b16 %v1331
    %v1468 = vunpack.c.l.b16 %v1332
    %v1469 = vunpack.c.l.b16 %v1333
    %v1470 = vunpack.c.l.b16 %v1334
    %v1471 = vunpack.c.l.b16 %v1335
    %v1472 = vunpack.c.l.b16 %v1336
    %v1473 = vunpack.c.l.b16 %v1337
    %v1474 = vunpack.c.l.b16 %v1338
    %v1475 = vunpack.c.l.b16 %v1339
    %v1476 = vunpack.c.l.b16 %v1340
    %v1477 = vunpack.c.l.b16 %v1341
    %v1478 = vunpack.c.l.b16 %v1342
    %v1479 = vunpack.c.l.b16 %v1343
    %v1480 = vunpack.c.l.b16 %v1344
    %v1481 = vunpack.c.l.b16 %v1345
    %v1482 = vunpack.c.l.b16 %v1346
    %v1483 = vunpack.c.l.b16 %v1347
    %v1484 = vunpack.c.l.b16 %v1348
    %v1485 = vunpack.c.l.b16 %v1349
    %v1486 = vunpack.c.l.b16 %v1350
    %v1487 = vunpack.c.l.b16 %v1351
    %v1488 = vunpack.c.l.b16 %v1352
    %v1489 = vunpack.c.l.b16 %v1353
    %v1490 = vunpack.c.l.b16 %v1354
    %v1491 = vunpack.c.l.b16 %v1355
    %v1492 = vunpack.c.l.b16 %v1356
    %v1493 = vunpack.c.l.b16 %v1357
    %v1494 = vunpack.c.l.b16 %v1358
    %v1495 = vunpack.c.l.b16 %v1359
    %v1496 = vunpack.c.l.b16 %v1360
    %v1497 = vunpack.c.l.b16 %v1361
    %v1498 = vunpack.c.l.b16 %v1362
    %v1499 = vunpack.c.l.b16 %v1363
    %v1500 = vunpack.c.l.b16 %v1364
    %v1501 = vunpack.c.l.b16 %v1365
    %v1502 = vunpack.c.l.b16 %v1366
    %v1503 = vunpack.c.l.b16 %v1367
    %v1504 = vunpack.c.l.b16 %v1368
    %v1505 = vunpack.c.l.b16 %v1369
    %v1506 = vunpack.c.l.b16 %v1370
    %v1507 = vunpack.c.l.b16 %v1371
    %v1508 = vunpack.c.l.b16 %v1372
    %v1509 = vunpack.c.l.b16 %v1373
    %v1510 = vunpack.c.l.b16 %v1374
    %v1511 = vunpack.c.l.b16 %v1375
    %v1512 = vunpack.c.l.b16 %v1376
    %v1513 = vunpack.c.l.b16 %v1377
    %v1514 = vunpack.c.l.b16 %v1378
    %v1515 = vunpack.c.l.b16 %v1379
    %v1516 = vunpack.c.l.b16 %v1380
    %v1517 = vunpack.c.l.b16 %v1381
    %v1518 = vunpack.c.l.b16 %v1382
    %v1519 = vunpack.c.l.b16 %v1383
    %v1520 = vunpack.c.l.b16 %v1384
    %v1521 = vunpack.c.l.b16 %v1385
    %v1522 = vunpack.c.l.b16 %v1386
    %v1523 = vunpack.c.l.b16 %v1387
    %v1524 = vunpack.c.l.b16 %v1388
    %v1525 = vunpack.c.l.b16 %v1389
    %v1526 = vunpack.c.l.b16 %v1390
    %v1527 = vunpack.c.l.b16 %v1391
    %v1528 = vunpack.c.l.b16 %v1392
    %v1529 = vunpack.c.l.b16 %v1393
    %v1530 = vunpack.c.l.b16 %v1394
    %v1531 = vpack.c.b16 %v1468, %v1467
    %v1532 = vpack.c.b16 %v1470, %v1469
    %v1533 = vpack.c.b16 %v1472, %v1471
    %v1534 = vpack.c.b16 %v1474, %v1473
    %v1535 = vpack.c.b16 %v1476, %v1475
    %v1536 = vpack.c.b16 %v1478, %v1477
    %v1537 = vpack.c.b16 %v1480, %v1479
    %v1538 = vpack.c.b16 %v1482, %v1481
    %v1539 = vpack.c.b16 %v1484, %v1483
    %v1540 = vpack.c.b16 %v1486, %v1485
    %v1541 = vpack.c.b16 %v1488, %v1487
    %v1542 = vpack.c.b16 %v1490, %v1489
    %v1543 = vpack.c.b16 %v1492, %v1491
    %v1544 = vpack.c.b16 %v1494, %v1493
    %v1545 = vpack.c.b16 %v1496, %v1495
    %v1546 = vpack.c.b16 %v1498, %v1497
    %v1547 = vpack.c.b16 %v1500, %v1499
    %v1548 = vpack.c.b16 %v1502, %v1501
    %v1549 = vpack.c.b16 %v1504, %v1503
    %v1550 = vpack.c.b16 %v1506, %v1505
    %v1551 = vpack.c.b16 %v1508, %v1507
    %v1552 = vpack.c.b16 %v1510, %v1509
    %v1553 = vpack.c.b16 %v1512, %v1511
    %v1554 = vpack.c.b16 %v1514, %v1513
    %v1555 = vpack.c.b16 %v1516, %v1515
    %v1556 = vpack.c.b16 %v1518, %v1517
    %v1557 = vpack.c.b16 %v1520, %v1519
    %v1558 = vpack.c.b16 %v1522, %v1521
    %v1559 = vpack.c.b16 %v1524, %v1523
    %v1560 = vpack.c.b16 %v1526, %v1525
    %v1561 = vpack.c.b16 %v1528, %v1527
    %v1562 = vpack.c.b16 %v1530, %v1529
    %1595 = vmatprep.subr.bf16.mxu0 0
    %1596 = vmatpush1.bf16.msra.mxu0 %v1538
    %1597 = vmatprep.subr.bf16.mxu0 0
    %1598 = vmatpush1.bf16.msra.mxu0 %v1537
    %1599 = vmatprep.subr.bf16.mxu0 0
    %1600 = vmatpush1.bf16.msra.mxu0 %v1536
    %1601 = vmatprep.subr.bf16.mxu0 0
    %1602 = vmatpush1.bf16.msra.mxu0 %v1535
    %1603 = vmatprep.subr.bf16.mxu0 0
    %1604 = vmatpush1.bf16.msra.mxu0 %v1534
    %1605 = vmatprep.subr.bf16.mxu0 0
    %1606 = vmatpush1.bf16.msra.mxu0 %v1533
    %1607 = vmatprep.subr.bf16.mxu0 0
    %1608 = vmatpush1.bf16.msra.mxu0 %v1532
    %1609 = vmatprep.subr.bf16.mxu0 0
    %1610 = vmatpush1.bf16.msra.mxu0 %v1531
    %1611 = vmatprep.subr.bf16.mxu0 0
    %1612 = vmatpush2.bf16.msra.mxu0 %v1546
    %1613 = vmatprep.subr.bf16.mxu0 0
    %1614 = vmatpush2.bf16.msra.mxu0 %v1545
    %1615 = vmatprep.subr.bf16.mxu0 0
    %1616 = vmatpush2.bf16.msra.mxu0 %v1544
    %1617 = vmatprep.subr.bf16.mxu0 0
    %1618 = vmatpush2.bf16.msra.mxu0 %v1543
    %1619 = vmatprep.subr.bf16.mxu0 0
    %1620 = vmatpush2.bf16.msra.mxu0 %v1542
    %1621 = vmatprep.subr.bf16.mxu0 0
    %1622 = vmatpush2.bf16.msra.mxu0 %v1541
    %1623 = vmatprep.subr.bf16.mxu0 0
    %1624 = vmatpush2.bf16.msra.mxu0 %v1540
    %1625 = vmatprep.subr.bf16.mxu0 0
    %1626 = vmatpush2.bf16.msra.mxu0 %v1539
    %1627 = vmatprep.mubr.bf16.mxu0 %v1396
    %1628 = vmatmul.mubr.bf16.gmra.mxu0 %v1395
    %v1629 = vpop.f32.mrf.mxu0
    %v1630 = vadd.f32 %v1402, %v1629
    %v1631 = vpop.f32.mrf.mxu0
    %v1632 = vpop.f32.mrf.mxu0
    %v1633 = vpop.f32.mrf.mxu0
    %1634 = vdwg.mxu0
    %1635 = vmatprep.subr.bf16.mxu0 0
    %1636 = vmatpush1.bf16.msra.mxu0 %v1554
    %1637 = vmatprep.subr.bf16.mxu0 0
    %1638 = vmatpush1.bf16.msra.mxu0 %v1553
    %1639 = vmatprep.subr.bf16.mxu0 0
    %1640 = vmatpush1.bf16.msra.mxu0 %v1552
    %1641 = vmatprep.subr.bf16.mxu0 0
    %1642 = vmatpush1.bf16.msra.mxu0 %v1551
    %1643 = vmatprep.subr.bf16.mxu0 0
    %1644 = vmatpush1.bf16.msra.mxu0 %v1550
    %1645 = vmatprep.subr.bf16.mxu0 0
    %1646 = vmatpush1.bf16.msra.mxu0 %v1549
    %1647 = vmatprep.subr.bf16.mxu0 0
    %1648 = vmatpush1.bf16.msra.mxu0 %v1548
    %1649 = vmatprep.subr.bf16.mxu0 0
    %1650 = vmatpush1.bf16.msra.mxu0 %v1547
    %1651 = vmatprep.subr.bf16.mxu0 0
    %1652 = vmatpush2.bf16.msra.mxu0 %v1562
    %1653 = vmatprep.subr.bf16.mxu0 0
    %1654 = vmatpush2.bf16.msra.mxu0 %v1561
    %1655 = vmatprep.subr.bf16.mxu0 0
    %1656 = vmatpush2.bf16.msra.mxu0 %v1560
    %1657 = vmatprep.subr.bf16.mxu0 0
    %1658 = vmatpush2.bf16.msra.mxu0 %v1559
    %1659 = vmatprep.subr.bf16.mxu0 0
    %1660 = vmatpush2.bf16.msra.mxu0 %v1558
    %1661 = vmatprep.subr.bf16.mxu0 0
    %1662 = vmatpush2.bf16.msra.mxu0 %v1557
    %1663 = vmatprep.subr.bf16.mxu0 0
    %1664 = vmatpush2.bf16.msra.mxu0 %v1556
    %1665 = vmatprep.subr.bf16.mxu0 0
    %1666 = vmatpush2.bf16.msra.mxu0 %v1555
    %1667 = vmatprep.mubr.bf16.mxu0 %v1398
    %1668 = vmatmul.mubr.bf16.gmra.mxu0 %v1397
    %v1669 = vpop.f32.mrf.mxu0
    %v1670 = vadd.f32 %v1630, %v1669
    %v1671 = vpop.f32.mrf.mxu0
    %v1672 = vpop.f32.mrf.mxu0
    %v1673 = vpop.f32.mrf.mxu0
    %1674 = vdwg.mxu0
    %v1675 = vtanh.pop %v1670
    %v1676 = vmax.f32 %v1675, -20.0
    %v1677 = vmin.f32 %v1676, 2.0
    %v1678 = vmul.f32 %v1677, 1.442695
    %v1679 = vpow.pop %v1678
    %1681 = vrot.lane.b32.xlu0 %v33, 8
    %v1682 = vpop.permute.xlu0 %1681
    %v1684 = vmul.f32 %v1679, %v1682
    %1686 = vrot.lane.b32.xlu0 %v1684, 120
    %v1687 = vpop.permute.xlu0 %1686
    %v1689 = vadd.f32 %v1675, %v1687
    %v1690 = vmul.f32 %v33, -0.5
    %v1691 = vmul.f32 %v1690, %v33
    %1693 = vrot.lane.b32.xlu0 %v1677, 120
    %v1694 = vpop.permute.xlu0 %1693
    %v1696 = vsub.f32 %v1691, %v1694
    %v1697 = vsub.f32 %v1696, 0.9189385
    %vm1698 = vcmask 64512
    %v1699 = vsel %vm1698, %v1697, 0.0
    %1700 = vadd.xlane.f32.xlu0 %v1699
    %v1701 = vpop.xlane.xlu0 %1700
    %v1702 = vsub.f32 1.3862944, %v1689
    %v1703 = vmul.f32 %v1689, -2.0
    %v1704 = vmax.f32 %v1703, 0.0
    %v1705 = vand.u32 2147483647, %v1703
    %v1706 = vsub.f32 0.0, %v1705
    %v1707 = vmul.f32 %v1706, 1.442695
    %v1708 = vpow.pop %v1707
    %v1709 = vadd.f32 %v1708, 1.0
    %v1710 = vlog2.pop %v1709
    %v1711 = vmul.f32 %v1710, 0.6931472
    %v1712 = vmul.f32 -0.5, %v1708
    %v1713 = vadd.f32 %v1712, 1.0
    %v1714 = vmul.f32 %v1713, %v1708
    %v1715 = vand.u32 2147483647, %v1708
    %vm1716 = vcmp.lt.f32.partialorder %v1715, 0.0004427343
    %v1717 = vsel %vm1716, %v1714, %v1711
    %v1718 = vadd.f32 %v1704, %v1717
    %v1719 = vsub.f32 %v1702, %v1718
    %v1720 = vsel %vm1698, %v1719, 0.0
    %1721 = vadd.xlane.f32.xlu0 %v1720
    %v1722 = vpop.xlane.xlu0 %1721
    %v1723 = vsub.f32 %v1701, %v1722
    %v1724 = vtanh.pop %v1689
    %v1725 = vsel %vm1698, %v1724, %v1723
    %1726 = vst.msk [vmem:[%s4] sm:$0xff] %vm61, %v1725
    // Predicated region
    $region22: #{squashed_actor_forward.1} parent=1 // pred_check
      _
    $region23: #{squashed_actor_forward.1} parent=1 // pred_check_branch
      %1728 = sbr.rel (0) target = $region25
    $region24: #{squashed_actor_forward.1} parent=1 // pred_region
      _
    $region25: #{squashed_actor_forward.1} parent=1 // pred_fallthru
      _
    // Predicated region
    $region26: #{squashed_actor_forward.1} parent=1 // pred_check
      _
    $region27: #{squashed_actor_forward.1} parent=1 // pred_check_branch
      %1730 = sbr.rel (0) target = $region29
    $region28: #{squashed_actor_forward.1} parent=1 // pred_region
      _
    $region29: #{squashed_actor_forward.1} parent=1 // pred_fallthru
      _
    %1731 = vsyncpa [#allocation3], 1

</llo_original>
